<compile_context>
chip_gen: v6e
topology: v6e:2x2x1
jax: 0.10.0
libtpu: 0.0.40
codegen_flags: <defaults>
</compile_context>

<pallas_src>
import math

import jax
import jax.numpy as jnp
from jax.experimental import pallas as pl
from jax.experimental.pallas import tpu as pltpu


def _make_kernel(c_out):
    inv_c = 1.0 / float(c_out)

    def kernel(a_ref, xk_ref, xi_ref, w_ref, wr_ref, p_ref, o_ref, acc_ref):
        k = pl.program_id(1)

        @pl.when(k == 0)
        def _init():
            acc_ref[...] = jnp.zeros_like(acc_ref)

        # --- GCNConv partial product:  A[i-tile, k-tile] @ (X[k-tile] @ W) -------
        # XW tile recomputed per step (Cin/Cout are tiny: negligible MXU work).
        xw = jnp.dot(xk_ref[...], w_ref[...],
                     preferred_element_type=jnp.float32)              # [TK, Cp] f32
        acc_ref[...] += jnp.dot(a_ref[...], xw.astype(jnp.bfloat16),
                                preferred_element_type=jnp.float32)   # [TM, Cp] f32

        # --- epilogue once per row tile ------------------------------------------
        @pl.when(k == pl.num_programs(1) - 1)
        def _finalize():
            b = p_ref[0:1, :]
            b_res = p_ref[1:2, :]
            gamma = p_ref[2:3, :]
            beta = p_ref[3:4, :]

            # Residual projection (nn.Linear, since in_channels != out_channels).
            identity = jnp.dot(xi_ref[...], wr_ref[...],
                               preferred_element_type=jnp.float32) + b_res
            y = acc_ref[...] + b + identity                           # [TM, Cp]

            # LayerNorm over the REAL c_out channels (padded lanes are zero, but
            # they must be excluded from the variance).
            lane = jax.lax.broadcasted_iota(jnp.int32, y.shape, 1)
            mask = lane < c_out
            mean = jnp.sum(jnp.where(mask, y, 0.0), axis=-1, keepdims=True) * inv_c
            diff = jnp.where(mask, y - mean, 0.0)
            var = jnp.sum(diff * diff, axis=-1, keepdims=True) * inv_c
            y_hat = (y - mean) * jax.lax.rsqrt(var + 1e-5) * gamma + beta

            # ReLU; dropout is identity in eval mode.
            o_ref[...] = jnp.maximum(y_hat, 0.0).astype(o_ref.dtype)

    return kernel


def residual_gcn_layer(x, a_norm, w, b, w_res, b_res, gamma, beta, *, tm=256, tk=256):
    """x: [N, Cin] f32, a_norm: [N, N] f32; returns [N, Cout] f32."""
    n, c_in = x.shape
    c_out = w.shape[1]

    rup = lambda v, m: -(-v // m) * m
    cin_p = rup(c_in, 128)
    cout_p = rup(c_out, 128)
    step = tm * tk // math.gcd(tm, tk)
    n_pad = rup(n, step)

    def pad2(arr, rows, cols):
        arr = arr.astype(jnp.float32)
        return jnp.pad(arr, ((0, rows - arr.shape[0]), (0, cols - arr.shape[1])))

    a_p = pad2(a_norm, n_pad, n_pad).astype(jnp.bfloat16)       # bf16 halves HBM traffic
    x_p = pad2(x, n_pad, cin_p)
    w_p = pad2(w, cin_p, cout_p)
    wr_p = pad2(w_res, cin_p, cout_p)
    params = jnp.concatenate([
        pad2(b.reshape(1, -1), 1, cout_p),
        pad2(b_res.reshape(1, -1), 1, cout_p),
        pad2(gamma.reshape(1, -1), 1, cout_p),
        pad2(beta.reshape(1, -1), 1, cout_p),
    ], axis=0)                                                   # (4, Cout_p)

    grid = (n_pad // tm, n_pad // tk)

    out = pl.pallas_call(
        _make_kernel(c_out),
        out_shape=jax.ShapeDtypeStruct((n_pad, cout_p), jnp.float32),
        grid_spec=pltpu.PrefetchScalarGridSpec(
            num_scalar_prefetch=0,
            grid=grid,
            in_specs=[
                pl.BlockSpec((tm, tk), lambda i, k: (i, k)),         # A_norm tile (bf16)
                pl.BlockSpec((tk, cin_p), lambda i, k: (k, 0)),      # X k-tile (for XW)
                pl.BlockSpec((tm, cin_p), lambda i, k: (i, 0)),      # X row-tile (residual)
                pl.BlockSpec((cin_p, cout_p), lambda i, k: (0, 0)),  # W  (GCNConv)
                pl.BlockSpec((cin_p, cout_p), lambda i, k: (0, 0)),  # W_res
                pl.BlockSpec((4, cout_p), lambda i, k: (0, 0)),      # packed b/b_res/gamma/beta
            ],
            out_specs=pl.BlockSpec((tm, cout_p), lambda i, k: (i, 0)),
            scratch_shapes=[pltpu.VMEM((tm, cout_p), jnp.float32)],  # f32 accumulator
        ),
        compiler_params=pltpu.CompilerParams(
            dimension_semantics=("parallel", "arbitrary"),
            vmem_limit_bytes=32 << 20,
        ),
    )(a_p, x_p, x_p, w_p, wr_p, params)

    return out[:n, :c_out]


def build_normalized_adjacency(edge_index, num_nodes):
    """Dense D^{-1/2}(A + I)D^{-1/2}, matching GCNConv's gcn_norm (add_self_loops=True).

    Note: duplicate edges are deduplicated (.set), which can differ from PyG on
    multigraphs; this is plain-JAX glue, not part of the kernel.
    """
    src, dst = edge_index[0], edge_index[1]
    a = jnp.zeros((num_nodes, num_nodes), jnp.float32)
    a = a.at[dst, src].set(1.0)            # message flows src -> dst
    a = a + jnp.eye(num_nodes, dtype=jnp.float32)
    deg = a.sum(axis=1)
    d_inv_sqrt = jnp.where(deg > 0, 1.0 / jnp.sqrt(deg), 0.0)
    return d_inv_sqrt[:, None] * a * d_inv_sqrt[None, :]


def _run_case(key, num_nodes, num_edges, c_in, c_out, tm, tk):
    k_x, k_e, k_w, k_b, k_wr, k_br = jax.random.split(key, 6)

    x = jax.random.normal(k_x, (num_nodes, c_in), jnp.float32)
    edge_index = jax.random.randint(k_e, (2, num_edges), 0, num_nodes, jnp.int32)
    a_norm = build_normalized_adjacency(edge_index, num_nodes)

    w = jax.random.normal(k_w, (c_in, c_out), jnp.float32) * 0.1       # GCNConv weight
    b = jax.random.normal(k_b, (1, c_out), jnp.float32) * 0.01         # GCNConv bias
    w_res = jax.random.normal(k_wr, (c_in, c_out), jnp.float32) * 0.1  # residual Linear
    b_res = jax.random.normal(k_br, (1, c_out), jnp.float32) * 0.01
    gamma = jnp.ones((1, c_out), jnp.float32)                          # LayerNorm weight
    beta = jnp.zeros((1, c_out), jnp.float32)                          # LayerNorm bias

    out = residual_gcn_layer(x, a_norm, w, b, w_res, b_res, gamma, beta, tm=tm, tk=tk)
    out = jax.block_until_ready(out)

    # Pure-JAX reference, mirroring the kernel's bf16 MXU inputs (f32 accumulate).
    a_bf = a_norm.astype(jnp.bfloat16).astype(jnp.float32)
    xw_bf = (x @ w).astype(jnp.bfloat16).astype(jnp.float32)
    ref_h = a_bf @ xw_bf + b
    ref_y = ref_h + (x @ w_res + b_res)
    mu = ref_y.mean(-1, keepdims=True)
    var = ((ref_y - mu) ** 2).mean(-1, keepdims=True)
    ref = jnp.maximum((ref_y - mu) / jnp.sqrt(var + 1e-5) * gamma + beta, 0.0)

    assert out.shape == (num_nodes, c_out)
    err = float(jnp.abs(out - ref).max())
    assert jnp.allclose(out, ref, atol=2e-2, rtol=2e-2), f"max abs err = {err}"


if __name__ == "__main__":
    key = jax.random.PRNGKey(0)
    k1, k2 = jax.random.split(key)

    # Small single-tile case (matches the module's tiny-shape sanity check).
    _run_case(k1, num_nodes=16, num_edges=32, c_in=8, c_out=32, tm=256, tk=256)

    # Multi-tile case exercising the k-accumulation (pl.when init/finalize) and
    # the parallel row-tile grid axis: N=300 -> N_pad=384, grid=(3, 3).
    _run_case(k2, num_nodes=300, num_edges=900, c_in=8, c_out=32, tm=128, tk=128)

    print("KERNEL_OK")
</pallas_src>

<mosaic_0001>
module attributes {stable_mosaic.version = 11 : i64} {
  func.func @kernel(%arg0: i32, %arg1: i32, %arg2: memref<256x256xbf16, #tpu.memory_space<vmem>>, %arg3: memref<256x128xf32, #tpu.memory_space<vmem>>, %arg4: memref<256x128xf32, #tpu.memory_space<vmem>>, %arg5: memref<128x128xf32, #tpu.memory_space<vmem>>, %arg6: memref<128x128xf32, #tpu.memory_space<vmem>>, %arg7: memref<4x128xf32, #tpu.memory_space<vmem>>, %arg8: memref<256x128xf32, #tpu.memory_space<vmem>>, %arg9: memref<256x128xf32, #tpu.memory_space<vmem>>) attributes {dimension_semantics = [#tpu.dimension_semantics<parallel>, #tpu.dimension_semantics<arbitrary>], iteration_bounds = array<i64: 1, 1>, scalar_prefetch = 0 : i64, scratch_operands = 1 : i64, tpu.core_type = #tpu.core_type<tc>, window_params = [{transform_indices = @transform_0, window_bounds = array<i64: 256, 256>}, {transform_indices = @transform_1, window_bounds = array<i64: 256, 128>}, {transform_indices = @transform_2, window_bounds = array<i64: 256, 128>}, {pipeline_mode = #tpu.pipeline_mode<synchronous>, transform_indices = @transform_3, window_bounds = array<i64: 128, 128>}, {pipeline_mode = #tpu.pipeline_mode<synchronous>, transform_indices = @transform_4, window_bounds = array<i64: 128, 128>}, {pipeline_mode = #tpu.pipeline_mode<synchronous>, transform_indices = @transform_5, window_bounds = array<i64: 4, 128>}, {transform_indices = @transform_6, window_bounds = array<i64: 256, 128>}]} {
    %c0_i32 = arith.constant 0 : i32
    %0 = arith.cmpi eq, %arg1, %c0_i32 : i32
    %1 = arith.extui %0 : i1 to i32
    %c0_i32_0 = arith.constant 0 : i32
    %2 = arith.cmpi ne, %1, %c0_i32_0 : i32
    scf.if %2 {
      %cst_13 = arith.constant 0.000000e+00 : f32
      %15 = vector.broadcast %cst_13 : f32 to vector<256x128xf32>
      %c0_14 = arith.constant 0 : index
      %c0_15 = arith.constant 0 : index
      %16 = vector.load %arg9[%c0_14, %c0_15] : memref<256x128xf32, #tpu.memory_space<vmem>>, vector<256x128xf32>
      tpu.vector_store %arg9[%c0_14, %c0_15], %15 {strides = array<i32>} : memref<256x128xf32, #tpu.memory_space<vmem>>, vector<256x128xf32>,
    } else {
    }
    %c0 = arith.constant 0 : index
    %c0_1 = arith.constant 0 : index
    %3 = vector.load %arg3[%c0, %c0_1] : memref<256x128xf32, #tpu.memory_space<vmem>>, vector<256x128xf32>
    %c0_2 = arith.constant 0 : index
    %c0_3 = arith.constant 0 : index
    %4 = vector.load %arg5[%c0_2, %c0_3] : memref<128x128xf32, #tpu.memory_space<vmem>>, vector<128x128xf32>
    %cst = arith.constant dense<0.000000e+00> : vector<256x128xf32>
    %5 = tpu.matmul %3, %4, %cst {dimension_numbers = #tpu.dot_dimension_numbers<[1], [0], [0], [1], [0, 0, 1, 1], [], []>} : vector<256x128xf32>, vector<128x128xf32>, vector<256x128xf32> -> vector<256x128xf32>
    %c0_4 = arith.constant 0 : index
    %c0_5 = arith.constant 0 : index
    %6 = vector.load %arg9[%c0_4, %c0_5] : memref<256x128xf32, #tpu.memory_space<vmem>>, vector<256x128xf32>
    %c0_6 = arith.constant 0 : index
    %c0_7 = arith.constant 0 : index
    %7 = vector.load %arg2[%c0_6, %c0_7] : memref<256x256xbf16, #tpu.memory_space<vmem>>, vector<256x256xbf16>
    %8 = arith.truncf %5 : vector<256x128xf32> to vector<256x128xbf16>
    %cst_8 = arith.constant dense<0.000000e+00> : vector<256x128xf32>
    %9 = tpu.matmul %7, %8, %cst_8 {dimension_numbers = #tpu.dot_dimension_numbers<[1], [0], [0], [1], [0, 0, 1, 1], [], []>} : vector<256x256xbf16>, vector<256x128xbf16>, vector<256x128xf32> -> vector<256x128xf32>
    %10 = arith.addf %6, %9 : vector<256x128xf32>
    %c0_9 = arith.constant 0 : index
    %c0_10 = arith.constant 0 : index
    %11 = vector.load %arg9[%c0_9, %c0_10] : memref<256x128xf32, #tpu.memory_space<vmem>>, vector<256x128xf32>
    tpu.vector_store %arg9[%c0_9, %c0_10], %10 {strides = array<i32>} : memref<256x128xf32, #tpu.memory_space<vmem>>, vector<256x128xf32>,
    %c0_i32_11 = arith.constant 0 : i32
    %12 = arith.cmpi eq, %arg1, %c0_i32_11 : i32
    %13 = arith.extui %12 : i1 to i32
    %c0_i32_12 = arith.constant 0 : i32
    %14 = arith.cmpi ne, %13, %c0_i32_12 : i32
    scf.if %14 {
      %c0_13 = arith.constant 0 : index
      %c0_14 = arith.constant 0 : index
      %15 = vector.load %arg7[%c0_13, %c0_14] : memref<4x128xf32, #tpu.memory_space<vmem>>, vector<1x128xf32>
      %c1 = arith.constant 1 : index
      %c0_15 = arith.constant 0 : index
      %16 = vector.load %arg7[%c1, %c0_15] : memref<4x128xf32, #tpu.memory_space<vmem>>, vector<1x128xf32>
      %c2 = arith.constant 2 : index
      %c0_16 = arith.constant 0 : index
      %17 = vector.load %arg7[%c2, %c0_16] : memref<4x128xf32, #tpu.memory_space<vmem>>, vector<1x128xf32>
      %c3 = arith.constant 3 : index
      %c0_17 = arith.constant 0 : index
      %18 = vector.load %arg7[%c3, %c0_17] : memref<4x128xf32, #tpu.memory_space<vmem>>, vector<1x128xf32>
      %c0_18 = arith.constant 0 : index
      %c0_19 = arith.constant 0 : index
      %19 = vector.load %arg4[%c0_18, %c0_19] : memref<256x128xf32, #tpu.memory_space<vmem>>, vector<256x128xf32>
      %c0_20 = arith.constant 0 : index
      %c0_21 = arith.constant 0 : index
      %20 = vector.load %arg6[%c0_20, %c0_21] : memref<128x128xf32, #tpu.memory_space<vmem>>, vector<128x128xf32>
      %cst_22 = arith.constant dense<0.000000e+00> : vector<256x128xf32>
      %21 = tpu.matmul %19, %20, %cst_22 {dimension_numbers = #tpu.dot_dimension_numbers<[1], [0], [0], [1], [0, 0, 1, 1], [], []>} : vector<256x128xf32>, vector<128x128xf32>, vector<256x128xf32> -> vector<256x128xf32>
      %22 = vector.broadcast %16 : vector<1x128xf32> to vector<256x128xf32>
      %23 = arith.addf %21, %22 : vector<256x128xf32>
      %c0_23 = arith.constant 0 : index
      %c0_24 = arith.constant 0 : index
      %24 = vector.load %arg9[%c0_23, %c0_24] : memref<256x128xf32, #tpu.memory_space<vmem>>, vector<256x128xf32>
      %25 = vector.broadcast %15 : vector<1x128xf32> to vector<256x128xf32>
      %26 = arith.addf %24, %25 : vector<256x128xf32>
      %27 = arith.addf %26, %23 : vector<256x128xf32>
      %28 = tpu.iota {dimensions = array<i32: 1>} : vector<256x128xi32>
      %c32_i32 = arith.constant 32 : i32
      %29 = vector.broadcast %c32_i32 : i32 to vector<256x128xi32>
      %30 = arith.cmpi slt, %28, %29 : vector<256x128xi32>
      %cst_25 = arith.constant 0.000000e+00 : f32
      %31 = vector.broadcast %cst_25 : f32 to vector<256x128xf32>
      %32 = arith.select %30, %27, %31 : vector<256x128xi1>, vector<256x128xf32>
      %cst_26 = arith.constant dense<0.000000e+00> : vector<256xf32>
      %33 = vector.multi_reduction <add>, %32, %cst_26 [1] : vector<256x128xf32> to vector<256xf32>
      %34 = vector.shape_cast %33 : vector<256xf32> to vector<256x1xf32>
      %cst_27 = arith.constant 3.125000e-02 : f32
      %35 = vector.broadcast %cst_27 : f32 to vector<256x1xf32>
      %36 = arith.mulf %34, %35 : vector<256x1xf32>
      %37 = vector.broadcast %36 : vector<256x1xf32> to vector<256x128xf32>
      %38 = arith.subf %27, %37 : vector<256x128xf32>
      %cst_28 = arith.constant 0.000000e+00 : f32
      %39 = vector.broadcast %cst_28 : f32 to vector<256x128xf32>
      %40 = arith.select %30, %38, %39 : vector<256x128xi1>, vector<256x128xf32>
      %41 = arith.mulf %40, %40 : vector<256x128xf32>
      %cst_29 = arith.constant dense<0.000000e+00> : vector<256xf32>
      %42 = vector.multi_reduction <add>, %41, %cst_29 [1] : vector<256x128xf32> to vector<256xf32>
      %43 = vector.shape_cast %42 : vector<256xf32> to vector<256x1xf32>
      %cst_30 = arith.constant 3.125000e-02 : f32
      %44 = vector.broadcast %cst_30 : f32 to vector<256x1xf32>
      %45 = arith.mulf %43, %44 : vector<256x1xf32>
      %46 = vector.broadcast %36 : vector<256x1xf32> to vector<256x128xf32>
      %47 = arith.subf %27, %46 : vector<256x128xf32>
      %cst_31 = arith.constant 9.99999974E-6 : f32
      %48 = vector.broadcast %cst_31 : f32 to vector<256x1xf32>
      %49 = arith.addf %45, %48 : vector<256x1xf32>
      %50 = math.rsqrt %49 : vector<256x1xf32>
      %51 = vector.broadcast %50 : vector<256x1xf32> to vector<256x128xf32>
      %52 = arith.mulf %47, %51 : vector<256x128xf32>
      %53 = vector.broadcast %17 : vector<1x128xf32> to vector<256x128xf32>
      %54 = arith.mulf %52, %53 : vector<256x128xf32>
      %55 = vector.broadcast %18 : vector<1x128xf32> to vector<256x128xf32>
      %56 = arith.addf %54, %55 : vector<256x128xf32>
      %cst_32 = arith.constant 0.000000e+00 : f32
      %57 = vector.broadcast %cst_32 : f32 to vector<256x128xf32>
      %58 = arith.maximumf %56, %57 : vector<256x128xf32>
      %c0_33 = arith.constant 0 : index
      %c0_34 = arith.constant 0 : index
      %59 = vector.load %arg8[%c0_33, %c0_34] : memref<256x128xf32, #tpu.memory_space<vmem>>, vector<256x128xf32>
      tpu.vector_store %arg8[%c0_33, %c0_34], %58 {strides = array<i32>} : memref<256x128xf32, #tpu.memory_space<vmem>>, vector<256x128xf32>,
    } else {
    }
    return
  }
  func.func @transform_0(%arg0: i32, %arg1: i32) -> (i32, i32) {
    %c0_i32 = arith.constant 0 : i32
    return %arg0, %arg1 : i32, i32
  }
  func.func @transform_1(%arg0: i32, %arg1: i32) -> (i32, i32) {
    %c0_i32 = arith.constant 0 : i32
    %c0_i32_0 = arith.constant 0 : i32
    return %arg1, %c0_i32 : i32, i32
  }
  func.func @transform_2(%arg0: i32, %arg1: i32) -> (i32, i32) {
    %c0_i32 = arith.constant 0 : i32
    %c0_i32_0 = arith.constant 0 : i32
    return %arg0, %c0_i32 : i32, i32
  }
  func.func @transform_3(%arg0: i32, %arg1: i32) -> (i32, i32) {
    %c0_i32 = arith.constant 0 : i32
    %c0_i32_0 = arith.constant 0 : i32
    %c0_i32_1 = arith.constant 0 : i32
    return %c0_i32, %c0_i32_0 : i32, i32
  }
  func.func @transform_4(%arg0: i32, %arg1: i32) -> (i32, i32) {
    %c0_i32 = arith.constant 0 : i32
    %c0_i32_0 = arith.constant 0 : i32
    %c0_i32_1 = arith.constant 0 : i32
    return %c0_i32, %c0_i32_0 : i32, i32
  }
  func.func @transform_5(%arg0: i32, %arg1: i32) -> (i32, i32) {
    %c0_i32 = arith.constant 0 : i32
    %c0_i32_0 = arith.constant 0 : i32
    %c0_i32_1 = arith.constant 0 : i32
    return %c0_i32, %c0_i32_0 : i32, i32
  }
  func.func @transform_6(%arg0: i32, %arg1: i32) -> (i32, i32) {
    %c0_i32 = arith.constant 0 : i32
    %c0_i32_0 = arith.constant 0 : i32
    return %arg0, %c0_i32 : i32, i32
  }
}

</mosaic_0001>

<llo_original>
// kernel: tpu_custom_call.1
$region0: #{tpu_custom_call.1}
  #allocation0 [shape = 'u32[]', space=smem, size = 0x4, offset = 0x4, fixed_abs, tag = 'smem constant byte address 0x4 - core index']
  #allocation1 [shape = 'u32[144,128]{1,0:T(1,128)}', space=vmem, size = 0x12000, scoped, tag = 'internal scratch']
  #allocation2 [shape = 'f32[256,128]{1,0:T(8,128)}', space=vmem, size = 0x20000, scoped, tag = 'scratch operand']
  %s0 = inlined_call_operand.hbm [shape: bf16[256,256], index: 0, kind: input, shape index: {}]
  %s1 = inlined_call_operand.hbm [shape: f32[256,128], index: 1, kind: input, shape index: {}]
  %s2 = inlined_call_operand.hbm [shape: f32[256,128], index: 2, kind: input, shape index: {}]
  %s3 = inlined_call_operand.hbm [shape: f32[128,128], index: 3, kind: input, shape index: {}]
  %s4 = inlined_call_operand.hbm [shape: f32[128,128], index: 4, kind: input, shape index: {}]
  %s5 = inlined_call_operand.vmem [shape: f32[4,128], index: 5, kind: input, shape index: {}]
  %s6 = inlined_call_operand.hbm [shape: f32[256,128], index: 6, kind: output, shape index: {}]
  %s7 = sld [smem:[#allocation0]]
  $region62: #{tpu_custom_call.1} parent=0
    _
  %s9 = ssub.s32 1, %s7
  %s10 = scalar_select 0, %s9, %s7
  $region1: #{tpu_custom_call.1} parent=0
    #allocation3 [shape = 'u8[131072]{0}', space=vmem, size = 0x20000, scoped, tag = 'input window, operand 0, single buffered']
    #allocation4 [shape = 's32[1]{0}', space=sflag, size = 0x4, scoped, tag = 'scoped memory for tpu_custom_call.1']
    #allocation5 [shape = 's32[1]{0}', space=sflag, size = 0x4, scoped, tag = 'scoped memory for tpu_custom_call.1']
    #allocation6 [shape = 'u8[131072]{0}', space=vmem, size = 0x20000, scoped, tag = 'input window, operand 1, single buffered']
    #allocation7 [shape = 's32[1]{0}', space=sflag, size = 0x4, scoped, tag = 'scoped memory for tpu_custom_call.1']
    #allocation8 [shape = 'u8[131072]{0}', space=vmem, size = 0x20000, scoped, tag = 'input window, operand 2, single buffered']
    #allocation9 [shape = 'u8[65536]{0}', space=vmem, size = 0x10000, scoped, tag = 'input window, operand 3, single buffered']
    #allocation10 [shape = 's32[1]{0}', space=sflag, size = 0x4, scoped, tag = 'scoped memory for tpu_custom_call.1']
    #allocation11 [shape = 'u8[65536]{0}', space=vmem, size = 0x10000, scoped, tag = 'input window, operand 4, single buffered']
    #allocation12 [shape = 'u8[131072]{0}', space=vmem, size = 0x20000, scoped, tag = 'output window, operand 0, single buffered']
    %11 = vsyncpa [#allocation4], 0
    %12 = vsyncpa [#allocation7], 0
    %13 = vsyncpa [#allocation10], 0
    %14 = vsyncpa [#allocation5], 0
    // Predicated region
    $region2: #{tpu_custom_call.1} parent=1 // pred_check
      _
    $region3: #{tpu_custom_call.1} parent=1 // pred_check_branch
      %16 = sbr.rel (0) target = $region5
    $region4: #{tpu_custom_call.1} parent=1 // pred_region
      %s18 = ssub.s32 4096, 4096
      %19 = vsyncadd [#allocation4], %s18
      %s20 = sshll.u32 [#allocation3], 4
      %s21 = int_to_ptr.vmem [resolvable:$true] %s20
      %26 = dma.hbm_to_vmem [thread:$0]  %s0, 4096, %s21, [#allocation4], 128, 128, 8
    $region5: #{tpu_custom_call.1} parent=1 // pred_fallthru
      _
    // Predicated region
    $region6: #{tpu_custom_call.1} parent=1 // pred_check
      _
    $region7: #{tpu_custom_call.1} parent=1 // pred_check_branch
      %28 = sbr.rel (0) target = $region9
    $region8: #{tpu_custom_call.1} parent=1 // pred_region
      %s30 = ssub.s32 4096, 4096
      %31 = vsyncadd [#allocation7], %s30
      %s32 = sshll.u32 [#allocation6], 4
      %s33 = int_to_ptr.vmem [resolvable:$true] %s32
      %38 = dma.hbm_to_vmem [thread:$0]  %s1, 4096, %s33, [#allocation7], 128, 128, 8
    $region9: #{tpu_custom_call.1} parent=1 // pred_fallthru
      _
    // Predicated region
    $region10: #{tpu_custom_call.1} parent=1 // pred_check
      _
    $region11: #{tpu_custom_call.1} parent=1 // pred_check_branch
      %40 = sbr.rel (0) target = $region13
    $region12: #{tpu_custom_call.1} parent=1 // pred_region
      %s42 = ssub.s32 4096, 4096
      %43 = vsyncadd [#allocation7], %s42
      %s44 = sshll.u32 [#allocation8], 4
      %s45 = int_to_ptr.vmem [resolvable:$true] %s44
      %50 = dma.hbm_to_vmem [thread:$0]  %s2, 4096, %s45, [#allocation7], 128, 128, 8
    $region13: #{tpu_custom_call.1} parent=1 // pred_fallthru
      _
    // Predicated region
    $region14: #{tpu_custom_call.1} parent=1 // pred_check
      _
    $region15: #{tpu_custom_call.1} parent=1 // pred_check_branch
      %52 = sbr.rel (0) target = $region17
    $region16: #{tpu_custom_call.1} parent=1 // pred_region
      %s54 = ssub.s32 2048, 2048
      %55 = vsyncadd [#allocation10], %s54
      %s56 = sshll.u32 [#allocation9], 4
      %s57 = int_to_ptr.vmem [resolvable:$true] %s56
      %62 = dma.hbm_to_vmem [thread:$0]  %s3, 2048, %s57, [#allocation10], 128, 128, 8
    $region17: #{tpu_custom_call.1} parent=1 // pred_fallthru
      _
    // Predicated region
    $region18: #{tpu_custom_call.1} parent=1 // pred_check
      _
    $region19: #{tpu_custom_call.1} parent=1 // pred_check_branch
      %64 = sbr.rel (0) target = $region21
    $region20: #{tpu_custom_call.1} parent=1 // pred_region
      %s66 = ssub.s32 2048, 2048
      %67 = vsyncadd [#allocation10], %s66
      %s68 = sshll.u32 [#allocation11], 4
      %s69 = int_to_ptr.vmem [resolvable:$true] %s68
      %74 = dma.hbm_to_vmem [thread:$0]  %s4, 2048, %s69, [#allocation10], 128, 128, 8
    $region21: #{tpu_custom_call.1} parent=1 // pred_fallthru
      _
    // Predicated region
    $region22: #{tpu_custom_call.1} parent=1 // pred_check
      _
    $region23: #{tpu_custom_call.1} parent=1 // pred_check_branch
      %76 = sbr.rel (0) target = $region25
    $region24: #{tpu_custom_call.1} parent=1 // pred_region
      _
    $region25: #{tpu_custom_call.1} parent=1 // pred_fallthru
      _
    // Predicated region
    $region26: #{tpu_custom_call.1} parent=1 // pred_check
      _
    $region27: #{tpu_custom_call.1} parent=1 // pred_check_branch
      %78 = sbr.rel (0) target = $region29
    $region28: #{tpu_custom_call.1} parent=1 // pred_region
      %79 = dma.done [#allocation4], 4096
    $region29: #{tpu_custom_call.1} parent=1 // pred_fallthru
      _
    // Predicated region
    $region30: #{tpu_custom_call.1} parent=1 // pred_check
      _
    $region31: #{tpu_custom_call.1} parent=1 // pred_check_branch
      %81 = sbr.rel (0) target = $region33
    $region32: #{tpu_custom_call.1} parent=1 // pred_region
      %82 = dma.done [#allocation7], 4096
    $region33: #{tpu_custom_call.1} parent=1 // pred_fallthru
      _
    // Predicated region
    $region34: #{tpu_custom_call.1} parent=1 // pred_check
      _
    $region35: #{tpu_custom_call.1} parent=1 // pred_check_branch
      %84 = sbr.rel (0) target = $region37
    $region36: #{tpu_custom_call.1} parent=1 // pred_region
      %85 = dma.done [#allocation7], 4096
    $region37: #{tpu_custom_call.1} parent=1 // pred_fallthru
      _
    // Predicated region
    $region38: #{tpu_custom_call.1} parent=1 // pred_check
      _
    $region39: #{tpu_custom_call.1} parent=1 // pred_check_branch
      %87 = sbr.rel (0) target = $region41
    $region40: #{tpu_custom_call.1} parent=1 // pred_region
      %88 = dma.done [#allocation10], 2048
    $region41: #{tpu_custom_call.1} parent=1 // pred_fallthru
      _
    // Predicated region
    $region42: #{tpu_custom_call.1} parent=1 // pred_check
      _
    $region43: #{tpu_custom_call.1} parent=1 // pred_check_branch
      %90 = sbr.rel (0) target = $region45
    $region44: #{tpu_custom_call.1} parent=1 // pred_region
      %91 = dma.done [#allocation10], 2048
    $region45: #{tpu_custom_call.1} parent=1 // pred_fallthru
      _
    %p93 = scmp.eq.s32.totalorder 0, 0
    // Predicated region
    $region46: #{tpu_custom_call.1} parent=1 // pred_check
      %p94 = pneg %p93
    $region47: #{tpu_custom_call.1} parent=1 // pred_check_branch
      %96 = sbr.rel (%p94) target = $region49
    $region48: #{tpu_custom_call.1} parent=1 // pred_region
      %97 = vst [vmem:[#allocation2] sm:$0xff] 0.0
      %98 = vst [vmem:[#allocation2 + $0x8] sm:$0xff] 0.0
      %99 = vst [vmem:[#allocation2 + $0x10] sm:$0xff] 0.0
      %100 = vst [vmem:[#allocation2 + $0x18] sm:$0xff] 0.0
      %101 = vst [vmem:[#allocation2 + $0x20] sm:$0xff] 0.0
      %102 = vst [vmem:[#allocation2 + $0x28] sm:$0xff] 0.0
      %103 = vst [vmem:[#allocation2 + $0x30] sm:$0xff] 0.0
      %104 = vst [vmem:[#allocation2 + $0x38] sm:$0xff] 0.0
      %105 = vst [vmem:[#allocation2 + $0x40] sm:$0xff] 0.0
      %106 = vst [vmem:[#allocation2 + $0x48] sm:$0xff] 0.0
      %107 = vst [vmem:[#allocation2 + $0x50] sm:$0xff] 0.0
      %108 = vst [vmem:[#allocation2 + $0x58] sm:$0xff] 0.0
      %109 = vst [vmem:[#allocation2 + $0x60] sm:$0xff] 0.0
      %110 = vst [vmem:[#allocation2 + $0x68] sm:$0xff] 0.0
      %111 = vst [vmem:[#allocation2 + $0x70] sm:$0xff] 0.0
      %112 = vst [vmem:[#allocation2 + $0x78] sm:$0xff] 0.0
      %113 = vst [vmem:[#allocation2 + $0x80] sm:$0xff] 0.0
      %114 = vst [vmem:[#allocation2 + $0x88] sm:$0xff] 0.0
      %115 = vst [vmem:[#allocation2 + $0x90] sm:$0xff] 0.0
      %116 = vst [vmem:[#allocation2 + $0x98] sm:$0xff] 0.0
      %117 = vst [vmem:[#allocation2 + $0xa0] sm:$0xff] 0.0
      %118 = vst [vmem:[#allocation2 + $0xa8] sm:$0xff] 0.0
      %119 = vst [vmem:[#allocation2 + $0xb0] sm:$0xff] 0.0
      %120 = vst [vmem:[#allocation2 + $0xb8] sm:$0xff] 0.0
      %121 = vst [vmem:[#allocation2 + $0xc0] sm:$0xff] 0.0
      %122 = vst [vmem:[#allocation2 + $0xc8] sm:$0xff] 0.0
      %123 = vst [vmem:[#allocation2 + $0xd0] sm:$0xff] 0.0
      %124 = vst [vmem:[#allocation2 + $0xd8] sm:$0xff] 0.0
      %125 = vst [vmem:[#allocation2 + $0xe0] sm:$0xff] 0.0
      %126 = vst [vmem:[#allocation2 + $0xe8] sm:$0xff] 0.0
      %127 = vst [vmem:[#allocation2 + $0xf0] sm:$0xff] 0.0
      %128 = vst [vmem:[#allocation2 + $0xf8] sm:$0xff] 0.0
    $region49: #{tpu_custom_call.1} parent=1 // pred_fallthru
      _
    %v129 = vld [vmem:[#allocation6] sm:$0xff]
    %v130 = vld [vmem:[#allocation6 + $0x8] sm:$0xff]
    %v131 = vld [vmem:[#allocation6 + $0x10] sm:$0xff]
    %v132 = vld [vmem:[#allocation6 + $0x18] sm:$0xff]
    %v133 = vld [vmem:[#allocation6 + $0x20] sm:$0xff]
    %v134 = vld [vmem:[#allocation6 + $0x28] sm:$0xff]
    %v135 = vld [vmem:[#allocation6 + $0x30] sm:$0xff]
    %v136 = vld [vmem:[#allocation6 + $0x38] sm:$0xff]
    %v137 = vld [vmem:[#allocation6 + $0x40] sm:$0xff]
    %v138 = vld [vmem:[#allocation6 + $0x48] sm:$0xff]
    %v139 = vld [vmem:[#allocation6 + $0x50] sm:$0xff]
    %v140 = vld [vmem:[#allocation6 + $0x58] sm:$0xff]
    %v141 = vld [vmem:[#allocation6 + $0x60] sm:$0xff]
    %v142 = vld [vmem:[#allocation6 + $0x68] sm:$0xff]
    %v143 = vld [vmem:[#allocation6 + $0x70] sm:$0xff]
    %v144 = vld [vmem:[#allocation6 + $0x78] sm:$0xff]
    %v145 = vld [vmem:[#allocation6 + $0x80] sm:$0xff]
    %v146 = vld [vmem:[#allocation6 + $0x88] sm:$0xff]
    %v147 = vld [vmem:[#allocation6 + $0x90] sm:$0xff]
    %v148 = vld [vmem:[#allocation6 + $0x98] sm:$0xff]
    %v149 = vld [vmem:[#allocation6 + $0xa0] sm:$0xff]
    %v150 = vld [vmem:[#allocation6 + $0xa8] sm:$0xff]
    %v151 = vld [vmem:[#allocation6 + $0xb0] sm:$0xff]
    %v152 = vld [vmem:[#allocation6 + $0xb8] sm:$0xff]
    %v153 = vld [vmem:[#allocation6 + $0xc0] sm:$0xff]
    %v154 = vld [vmem:[#allocation6 + $0xc8] sm:$0xff]
    %v155 = vld [vmem:[#allocation6 + $0xd0] sm:$0xff]
    %v156 = vld [vmem:[#allocation6 + $0xd8] sm:$0xff]
    %v157 = vld [vmem:[#allocation6 + $0xe0] sm:$0xff]
    %v158 = vld [vmem:[#allocation6 + $0xe8] sm:$0xff]
    %v159 = vld [vmem:[#allocation6 + $0xf0] sm:$0xff]
    %v160 = vld [vmem:[#allocation6 + $0xf8] sm:$0xff]
    %v161 = vld [vmem:[#allocation9] sm:$0xff]
    %v162 = vld [vmem:[#allocation9 + $0x8] sm:$0xff]
    %v163 = vld [vmem:[#allocation9 + $0x10] sm:$0xff]
    %v164 = vld [vmem:[#allocation9 + $0x18] sm:$0xff]
    %v165 = vld [vmem:[#allocation9 + $0x20] sm:$0xff]
    %v166 = vld [vmem:[#allocation9 + $0x28] sm:$0xff]
    %v167 = vld [vmem:[#allocation9 + $0x30] sm:$0xff]
    %v168 = vld [vmem:[#allocation9 + $0x38] sm:$0xff]
    %v169 = vld [vmem:[#allocation9 + $0x40] sm:$0xff]
    %v170 = vld [vmem:[#allocation9 + $0x48] sm:$0xff]
    %v171 = vld [vmem:[#allocation9 + $0x50] sm:$0xff]
    %v172 = vld [vmem:[#allocation9 + $0x58] sm:$0xff]
    %v173 = vld [vmem:[#allocation9 + $0x60] sm:$0xff]
    %v174 = vld [vmem:[#allocation9 + $0x68] sm:$0xff]
    %v175 = vld [vmem:[#allocation9 + $0x70] sm:$0xff]
    %v176 = vld [vmem:[#allocation9 + $0x78] sm:$0xff]
    %177 = vmatprep.subr.mxu0 0.0
    %178 = vmatpush1.msra.mxu0 %v176
    %179 = vmatprep.subr.mxu0 0.0
    %180 = vmatpush1.msra.mxu0 %v175
    %181 = vmatprep.subr.mxu0 0.0
    %182 = vmatpush1.msra.mxu0 %v174
    %183 = vmatprep.subr.mxu0 0.0
    %184 = vmatpush1.msra.mxu0 %v173
    %185 = vmatprep.subr.mxu0 0.0
    %186 = vmatpush1.msra.mxu0 %v172
    %187 = vmatprep.subr.mxu0 0.0
    %188 = vmatpush1.msra.mxu0 %v171
    %189 = vmatprep.subr.mxu0 0.0
    %190 = vmatpush1.msra.mxu0 %v170
    %191 = vmatprep.subr.mxu0 0.0
    %192 = vmatpush1.msra.mxu0 %v169
    %193 = vmatprep.subr.mxu0 0.0
    %194 = vmatpush1.msra.mxu0 %v168
    %195 = vmatprep.subr.mxu0 0.0
    %196 = vmatpush1.msra.mxu0 %v167
    %197 = vmatprep.subr.mxu0 0.0
    %198 = vmatpush1.msra.mxu0 %v166
    %199 = vmatprep.subr.mxu0 0.0
    %200 = vmatpush1.msra.mxu0 %v165
    %201 = vmatprep.subr.mxu0 0.0
    %202 = vmatpush1.msra.mxu0 %v164
    %203 = vmatprep.subr.mxu0 0.0
    %204 = vmatpush1.msra.mxu0 %v163
    %205 = vmatprep.subr.mxu0 0.0
    %206 = vmatpush1.msra.mxu0 %v162
    %207 = vmatprep.subr.mxu0 0.0
    %208 = vmatpush1.msra.mxu0 %v161
    %209 = vmatprep.subr.mxu0 0.0
    %210 = vmatpush2.msra.mxu0 0.0
    %211 = vmatprep.subr.mxu0 0.0
    %212 = vmatpush2.msra.mxu0 0.0
    %213 = vmatprep.subr.mxu0 0.0
    %214 = vmatpush2.msra.mxu0 0.0
    %215 = vmatprep.subr.mxu0 0.0
    %216 = vmatpush2.msra.mxu0 0.0
    %217 = vmatprep.subr.mxu0 0.0
    %218 = vmatpush2.msra.mxu0 0.0
    %219 = vmatprep.subr.mxu0 0.0
    %220 = vmatpush2.msra.mxu0 0.0
    %221 = vmatprep.subr.mxu0 0.0
    %222 = vmatpush2.msra.mxu0 0.0
    %223 = vmatprep.subr.mxu0 0.0
    %224 = vmatpush2.msra.mxu0 0.0
    %225 = vmatprep.subr.mxu0 0.0
    %226 = vmatpush2.msra.mxu0 0.0
    %227 = vmatprep.subr.mxu0 0.0
    %228 = vmatpush2.msra.mxu0 0.0
    %229 = vmatprep.subr.mxu0 0.0
    %230 = vmatpush2.msra.mxu0 0.0
    %231 = vmatprep.subr.mxu0 0.0
    %232 = vmatpush2.msra.mxu0 0.0
    %233 = vmatprep.subr.mxu0 0.0
    %234 = vmatpush2.msra.mxu0 0.0
    %235 = vmatprep.subr.mxu0 0.0
    %236 = vmatpush2.msra.mxu0 0.0
    %237 = vmatprep.subr.mxu0 0.0
    %238 = vmatpush2.msra.mxu0 0.0
    %239 = vmatprep.subr.mxu0 0.0
    %240 = vmatpush2.msra.mxu0 0.0
    %241 = vmatprep.mubr.f32.mxu0 0.0
    %242 = vmatmul.mubr.f32.gmra.mxu0 %v129
    %v243 = vpop.f32.mrf.mxu0
    %v244 = vadd.f32 0.0, %v243
    %v245 = vpop.f32.mrf.mxu0
    %246 = vmatprep.mubr.f32.mxu0 0.0
    %247 = vmatmul.mubr.f32.gmra.mxu0 %v130
    %v248 = vpop.f32.mrf.mxu0
    %v249 = vadd.f32 0.0, %v248
    %v250 = vpop.f32.mrf.mxu0
    %251 = vmatprep.mubr.f32.mxu0 0.0
    %252 = vmatmul.mubr.f32.gmra.mxu0 %v131
    %v253 = vpop.f32.mrf.mxu0
    %v254 = vadd.f32 0.0, %v253
    %v255 = vpop.f32.mrf.mxu0
    %256 = vmatprep.mubr.f32.mxu0 0.0
    %257 = vmatmul.mubr.f32.gmra.mxu0 %v132
    %v258 = vpop.f32.mrf.mxu0
    %v259 = vadd.f32 0.0, %v258
    %v260 = vpop.f32.mrf.mxu0
    %261 = vmatprep.mubr.f32.mxu0 0.0
    %262 = vmatmul.mubr.f32.gmra.mxu0 %v133
    %v263 = vpop.f32.mrf.mxu0
    %v264 = vadd.f32 0.0, %v263
    %v265 = vpop.f32.mrf.mxu0
    %266 = vmatprep.mubr.f32.mxu0 0.0
    %267 = vmatmul.mubr.f32.gmra.mxu0 %v134
    %v268 = vpop.f32.mrf.mxu0
    %v269 = vadd.f32 0.0, %v268
    %v270 = vpop.f32.mrf.mxu0
    %271 = vmatprep.mubr.f32.mxu0 0.0
    %272 = vmatmul.mubr.f32.gmra.mxu0 %v135
    %v273 = vpop.f32.mrf.mxu0
    %v274 = vadd.f32 0.0, %v273
    %v275 = vpop.f32.mrf.mxu0
    %276 = vmatprep.mubr.f32.mxu0 0.0
    %277 = vmatmul.mubr.f32.gmra.mxu0 %v136
    %v278 = vpop.f32.mrf.mxu0
    %v279 = vadd.f32 0.0, %v278
    %v280 = vpop.f32.mrf.mxu0
    %281 = vmatprep.mubr.f32.mxu0 0.0
    %282 = vmatmul.mubr.f32.gmra.mxu0 %v137
    %v283 = vpop.f32.mrf.mxu0
    %v284 = vadd.f32 0.0, %v283
    %v285 = vpop.f32.mrf.mxu0
    %286 = vmatprep.mubr.f32.mxu0 0.0
    %287 = vmatmul.mubr.f32.gmra.mxu0 %v138
    %v288 = vpop.f32.mrf.mxu0
    %v289 = vadd.f32 0.0, %v288
    %v290 = vpop.f32.mrf.mxu0
    %291 = vmatprep.mubr.f32.mxu0 0.0
    %292 = vmatmul.mubr.f32.gmra.mxu0 %v139
    %v293 = vpop.f32.mrf.mxu0
    %v294 = vadd.f32 0.0, %v293
    %v295 = vpop.f32.mrf.mxu0
    %296 = vmatprep.mubr.f32.mxu0 0.0
    %297 = vmatmul.mubr.f32.gmra.mxu0 %v140
    %v298 = vpop.f32.mrf.mxu0
    %v299 = vadd.f32 0.0, %v298
    %v300 = vpop.f32.mrf.mxu0
    %301 = vmatprep.mubr.f32.mxu0 0.0
    %302 = vmatmul.mubr.f32.gmra.mxu0 %v141
    %v303 = vpop.f32.mrf.mxu0
    %v304 = vadd.f32 0.0, %v303
    %v305 = vpop.f32.mrf.mxu0
    %306 = vmatprep.mubr.f32.mxu0 0.0
    %307 = vmatmul.mubr.f32.gmra.mxu0 %v142
    %v308 = vpop.f32.mrf.mxu0
    %v309 = vadd.f32 0.0, %v308
    %v310 = vpop.f32.mrf.mxu0
    %311 = vmatprep.mubr.f32.mxu0 0.0
    %312 = vmatmul.mubr.f32.gmra.mxu0 %v143
    %v313 = vpop.f32.mrf.mxu0
    %v314 = vadd.f32 0.0, %v313
    %v315 = vpop.f32.mrf.mxu0
    %316 = vmatprep.mubr.f32.mxu0 0.0
    %317 = vmatmul.mubr.f32.gmra.mxu0 %v144
    %v318 = vpop.f32.mrf.mxu0
    %v319 = vadd.f32 0.0, %v318
    %v320 = vpop.f32.mrf.mxu0
    %321 = vmatprep.mubr.f32.mxu0 0.0
    %322 = vmatmul.mubr.f32.gmra.mxu0 %v145
    %v323 = vpop.f32.mrf.mxu0
    %v324 = vadd.f32 0.0, %v323
    %v325 = vpop.f32.mrf.mxu0
    %326 = vmatprep.mubr.f32.mxu0 0.0
    %327 = vmatmul.mubr.f32.gmra.mxu0 %v146
    %v328 = vpop.f32.mrf.mxu0
    %v329 = vadd.f32 0.0, %v328
    %v330 = vpop.f32.mrf.mxu0
    %331 = vmatprep.mubr.f32.mxu0 0.0
    %332 = vmatmul.mubr.f32.gmra.mxu0 %v147
    %v333 = vpop.f32.mrf.mxu0
    %v334 = vadd.f32 0.0, %v333
    %v335 = vpop.f32.mrf.mxu0
    %336 = vmatprep.mubr.f32.mxu0 0.0
    %337 = vmatmul.mubr.f32.gmra.mxu0 %v148
    %v338 = vpop.f32.mrf.mxu0
    %v339 = vadd.f32 0.0, %v338
    %v340 = vpop.f32.mrf.mxu0
    %341 = vmatprep.mubr.f32.mxu0 0.0
    %342 = vmatmul.mubr.f32.gmra.mxu0 %v149
    %v343 = vpop.f32.mrf.mxu0
    %v344 = vadd.f32 0.0, %v343
    %v345 = vpop.f32.mrf.mxu0
    %346 = vmatprep.mubr.f32.mxu0 0.0
    %347 = vmatmul.mubr.f32.gmra.mxu0 %v150
    %v348 = vpop.f32.mrf.mxu0
    %v349 = vadd.f32 0.0, %v348
    %v350 = vpop.f32.mrf.mxu0
    %351 = vmatprep.mubr.f32.mxu0 0.0
    %352 = vmatmul.mubr.f32.gmra.mxu0 %v151
    %v353 = vpop.f32.mrf.mxu0
    %v354 = vadd.f32 0.0, %v353
    %v355 = vpop.f32.mrf.mxu0
    %356 = vmatprep.mubr.f32.mxu0 0.0
    %357 = vmatmul.mubr.f32.gmra.mxu0 %v152
    %v358 = vpop.f32.mrf.mxu0
    %v359 = vadd.f32 0.0, %v358
    %v360 = vpop.f32.mrf.mxu0
    %361 = vmatprep.mubr.f32.mxu0 0.0
    %362 = vmatmul.mubr.f32.gmra.mxu0 %v153
    %v363 = vpop.f32.mrf.mxu0
    %v364 = vadd.f32 0.0, %v363
    %v365 = vpop.f32.mrf.mxu0
    %366 = vmatprep.mubr.f32.mxu0 0.0
    %367 = vmatmul.mubr.f32.gmra.mxu0 %v154
    %v368 = vpop.f32.mrf.mxu0
    %v369 = vadd.f32 0.0, %v368
    %v370 = vpop.f32.mrf.mxu0
    %371 = vmatprep.mubr.f32.mxu0 0.0
    %372 = vmatmul.mubr.f32.gmra.mxu0 %v155
    %v373 = vpop.f32.mrf.mxu0
    %v374 = vadd.f32 0.0, %v373
    %v375 = vpop.f32.mrf.mxu0
    %376 = vmatprep.mubr.f32.mxu0 0.0
    %377 = vmatmul.mubr.f32.gmra.mxu0 %v156
    %v378 = vpop.f32.mrf.mxu0
    %v379 = vadd.f32 0.0, %v378
    %v380 = vpop.f32.mrf.mxu0
    %381 = vmatprep.mubr.f32.mxu0 0.0
    %382 = vmatmul.mubr.f32.gmra.mxu0 %v157
    %v383 = vpop.f32.mrf.mxu0
    %v384 = vadd.f32 0.0, %v383
    %v385 = vpop.f32.mrf.mxu0
    %386 = vmatprep.mubr.f32.mxu0 0.0
    %387 = vmatmul.mubr.f32.gmra.mxu0 %v158
    %v388 = vpop.f32.mrf.mxu0
    %v389 = vadd.f32 0.0, %v388
    %v390 = vpop.f32.mrf.mxu0
    %391 = vmatprep.mubr.f32.mxu0 0.0
    %392 = vmatmul.mubr.f32.gmra.mxu0 %v159
    %v393 = vpop.f32.mrf.mxu0
    %v394 = vadd.f32 0.0, %v393
    %v395 = vpop.f32.mrf.mxu0
    %396 = vmatprep.mubr.f32.mxu0 0.0
    %397 = vmatmul.mubr.f32.gmra.mxu0 %v160
    %v398 = vpop.f32.mrf.mxu0
    %v399 = vadd.f32 0.0, %v398
    %v400 = vpop.f32.mrf.mxu0
    %401 = vdwg.mxu0
    %v402 = vld [vmem:[#allocation2] sm:$0xff]
    %v403 = vld [vmem:[#allocation2 + $0x8] sm:$0xff]
    %v404 = vld [vmem:[#allocation2 + $0x10] sm:$0xff]
    %v405 = vld [vmem:[#allocation2 + $0x18] sm:$0xff]
    %v406 = vld [vmem:[#allocation2 + $0x20] sm:$0xff]
    %v407 = vld [vmem:[#allocation2 + $0x28] sm:$0xff]
    %v408 = vld [vmem:[#allocation2 + $0x30] sm:$0xff]
    %v409 = vld [vmem:[#allocation2 + $0x38] sm:$0xff]
    %v410 = vld [vmem:[#allocation2 + $0x40] sm:$0xff]
    %v411 = vld [vmem:[#allocation2 + $0x48] sm:$0xff]
    %v412 = vld [vmem:[#allocation2 + $0x50] sm:$0xff]
    %v413 = vld [vmem:[#allocation2 + $0x58] sm:$0xff]
    %v414 = vld [vmem:[#allocation2 + $0x60] sm:$0xff]
    %v415 = vld [vmem:[#allocation2 + $0x68] sm:$0xff]
    %v416 = vld [vmem:[#allocation2 + $0x70] sm:$0xff]
    %v417 = vld [vmem:[#allocation2 + $0x78] sm:$0xff]
    %v418 = vld [vmem:[#allocation2 + $0x80] sm:$0xff]
    %v419 = vld [vmem:[#allocation2 + $0x88] sm:$0xff]
    %v420 = vld [vmem:[#allocation2 + $0x90] sm:$0xff]
    %v421 = vld [vmem:[#allocation2 + $0x98] sm:$0xff]
    %v422 = vld [vmem:[#allocation2 + $0xa0] sm:$0xff]
    %v423 = vld [vmem:[#allocation2 + $0xa8] sm:$0xff]
    %v424 = vld [vmem:[#allocation2 + $0xb0] sm:$0xff]
    %v425 = vld [vmem:[#allocation2 + $0xb8] sm:$0xff]
    %v426 = vld [vmem:[#allocation2 + $0xc0] sm:$0xff]
    %v427 = vld [vmem:[#allocation2 + $0xc8] sm:$0xff]
    %v428 = vld [vmem:[#allocation2 + $0xd0] sm:$0xff]
    %v429 = vld [vmem:[#allocation2 + $0xd8] sm:$0xff]
    %v430 = vld [vmem:[#allocation2 + $0xe0] sm:$0xff]
    %v431 = vld [vmem:[#allocation2 + $0xe8] sm:$0xff]
    %v432 = vld [vmem:[#allocation2 + $0xf0] sm:$0xff]
    %v433 = vld [vmem:[#allocation2 + $0xf8] sm:$0xff]
    %v434 = vld [vmem:[#allocation3] sm:$0xff]
    %v435 = vld [vmem:[#allocation3 + $0x8] sm:$0xff]
    %v436 = vld [vmem:[#allocation3 + $0x10] sm:$0xff]
    %v437 = vld [vmem:[#allocation3 + $0x18] sm:$0xff]
    %v438 = vld [vmem:[#allocation3 + $0x20] sm:$0xff]
    %v439 = vld [vmem:[#allocation3 + $0x28] sm:$0xff]
    %v440 = vld [vmem:[#allocation3 + $0x30] sm:$0xff]
    %v441 = vld [vmem:[#allocation3 + $0x38] sm:$0xff]
    %v442 = vld [vmem:[#allocation3 + $0x40] sm:$0xff]
    %v443 = vld [vmem:[#allocation3 + $0x48] sm:$0xff]
    %v444 = vld [vmem:[#allocation3 + $0x50] sm:$0xff]
    %v445 = vld [vmem:[#allocation3 + $0x58] sm:$0xff]
    %v446 = vld [vmem:[#allocation3 + $0x60] sm:$0xff]
    %v447 = vld [vmem:[#allocation3 + $0x68] sm:$0xff]
    %v448 = vld [vmem:[#allocation3 + $0x70] sm:$0xff]
    %v449 = vld [vmem:[#allocation3 + $0x78] sm:$0xff]
    %v450 = vld [vmem:[#allocation3 + $0x80] sm:$0xff]
    %v451 = vld [vmem:[#allocation3 + $0x88] sm:$0xff]
    %v452 = vld [vmem:[#allocation3 + $0x90] sm:$0xff]
    %v453 = vld [vmem:[#allocation3 + $0x98] sm:$0xff]
    %v454 = vld [vmem:[#allocation3 + $0xa0] sm:$0xff]
    %v455 = vld [vmem:[#allocation3 + $0xa8] sm:$0xff]
    %v456 = vld [vmem:[#allocation3 + $0xb0] sm:$0xff]
    %v457 = vld [vmem:[#allocation3 + $0xb8] sm:$0xff]
    %v458 = vld [vmem:[#allocation3 + $0xc0] sm:$0xff]
    %v459 = vld [vmem:[#allocation3 + $0xc8] sm:$0xff]
    %v460 = vld [vmem:[#allocation3 + $0xd0] sm:$0xff]
    %v461 = vld [vmem:[#allocation3 + $0xd8] sm:$0xff]
    %v462 = vld [vmem:[#allocation3 + $0xe0] sm:$0xff]
    %v463 = vld [vmem:[#allocation3 + $0xe8] sm:$0xff]
    %v464 = vld [vmem:[#allocation3 + $0xf0] sm:$0xff]
    %v465 = vld [vmem:[#allocation3 + $0xf8] sm:$0xff]
    %v466 = vpack.c.bf16 %v249, %v244
    %v467 = vpack.c.bf16 %v259, %v254
    %v468 = vpack.c.bf16 %v269, %v264
    %v469 = vpack.c.bf16 %v279, %v274
    %v470 = vpack.c.bf16 %v289, %v284
    %v471 = vpack.c.bf16 %v299, %v294
    %v472 = vpack.c.bf16 %v309, %v304
    %v473 = vpack.c.bf16 %v319, %v314
    %v474 = vpack.c.bf16 %v329, %v324
    %v475 = vpack.c.bf16 %v339, %v334
    %v476 = vpack.c.bf16 %v349, %v344
    %v477 = vpack.c.bf16 %v359, %v354
    %v478 = vpack.c.bf16 %v369, %v364
    %v479 = vpack.c.bf16 %v379, %v374
    %v480 = vpack.c.bf16 %v389, %v384
    %v481 = vpack.c.bf16 %v399, %v394
    %v514 = vunpack.c.l.b16 %v434
    %v515 = vunpack.c.h.b16 %v434
    %v516 = vunpack.c.l.b16 %v435
    %v517 = vunpack.c.h.b16 %v435
    %v518 = vunpack.c.l.b16 %v436
    %v519 = vunpack.c.h.b16 %v436
    %v520 = vunpack.c.l.b16 %v437
    %v521 = vunpack.c.h.b16 %v437
    %v522 = vunpack.c.l.b16 %v438
    %v523 = vunpack.c.h.b16 %v438
    %v524 = vunpack.c.l.b16 %v439
    %v525 = vunpack.c.h.b16 %v439
    %v526 = vunpack.c.l.b16 %v440
    %v527 = vunpack.c.h.b16 %v440
    %v528 = vunpack.c.l.b16 %v441
    %v529 = vunpack.c.h.b16 %v441
    %v530 = vunpack.c.l.b16 %v442
    %v531 = vunpack.c.h.b16 %v442
    %v532 = vunpack.c.l.b16 %v443
    %v533 = vunpack.c.h.b16 %v443
    %v534 = vunpack.c.l.b16 %v444
    %v535 = vunpack.c.h.b16 %v444
    %v536 = vunpack.c.l.b16 %v445
    %v537 = vunpack.c.h.b16 %v445
    %v538 = vunpack.c.l.b16 %v446
    %v539 = vunpack.c.h.b16 %v446
    %v540 = vunpack.c.l.b16 %v447
    %v541 = vunpack.c.h.b16 %v447
    %v542 = vunpack.c.l.b16 %v448
    %v543 = vunpack.c.h.b16 %v448
    %v544 = vunpack.c.l.b16 %v449
    %v545 = vunpack.c.h.b16 %v449
    %v546 = vunpack.c.l.b16 %v450
    %v547 = vunpack.c.h.b16 %v450
    %v548 = vunpack.c.l.b16 %v451
    %v549 = vunpack.c.h.b16 %v451
    %v550 = vunpack.c.l.b16 %v452
    %v551 = vunpack.c.h.b16 %v452
    %v552 = vunpack.c.l.b16 %v453
    %v553 = vunpack.c.h.b16 %v453
    %v554 = vunpack.c.l.b16 %v454
    %v555 = vunpack.c.h.b16 %v454
    %v556 = vunpack.c.l.b16 %v455
    %v557 = vunpack.c.h.b16 %v455
    %v558 = vunpack.c.l.b16 %v456
    %v559 = vunpack.c.h.b16 %v456
    %v560 = vunpack.c.l.b16 %v457
    %v561 = vunpack.c.h.b16 %v457
    %v562 = vunpack.c.l.b16 %v458
    %v563 = vunpack.c.h.b16 %v458
    %v564 = vunpack.c.l.b16 %v459
    %v565 = vunpack.c.h.b16 %v459
    %v566 = vunpack.c.l.b16 %v460
    %v567 = vunpack.c.h.b16 %v460
    %v568 = vunpack.c.l.b16 %v461
    %v569 = vunpack.c.h.b16 %v461
    %v570 = vunpack.c.l.b16 %v462
    %v571 = vunpack.c.h.b16 %v462
    %v572 = vunpack.c.l.b16 %v463
    %v573 = vunpack.c.h.b16 %v463
    %v574 = vunpack.c.l.b16 %v464
    %v575 = vunpack.c.h.b16 %v464
    %v576 = vunpack.c.l.b16 %v465
    %v577 = vunpack.c.h.b16 %v465
    %v578 = vpack.c.b16 %v516, %v514
    %v579 = vpack.c.b16 %v517, %v515
    %v580 = vpack.c.b16 %v520, %v518
    %v581 = vpack.c.b16 %v521, %v519
    %v582 = vpack.c.b16 %v524, %v522
    %v583 = vpack.c.b16 %v525, %v523
    %v584 = vpack.c.b16 %v528, %v526
    %v585 = vpack.c.b16 %v529, %v527
    %v586 = vpack.c.b16 %v532, %v530
    %v587 = vpack.c.b16 %v533, %v531
    %v588 = vpack.c.b16 %v536, %v534
    %v589 = vpack.c.b16 %v537, %v535
    %v590 = vpack.c.b16 %v540, %v538
    %v591 = vpack.c.b16 %v541, %v539
    %v592 = vpack.c.b16 %v544, %v542
    %v593 = vpack.c.b16 %v545, %v543
    %v594 = vpack.c.b16 %v548, %v546
    %v595 = vpack.c.b16 %v549, %v547
    %v596 = vpack.c.b16 %v552, %v550
    %v597 = vpack.c.b16 %v553, %v551
    %v598 = vpack.c.b16 %v556, %v554
    %v599 = vpack.c.b16 %v557, %v555
    %v600 = vpack.c.b16 %v560, %v558
    %v601 = vpack.c.b16 %v561, %v559
    %v602 = vpack.c.b16 %v564, %v562
    %v603 = vpack.c.b16 %v565, %v563
    %v604 = vpack.c.b16 %v568, %v566
    %v605 = vpack.c.b16 %v569, %v567
    %v606 = vpack.c.b16 %v572, %v570
    %v607 = vpack.c.b16 %v573, %v571
    %v608 = vpack.c.b16 %v576, %v574
    %v609 = vpack.c.b16 %v577, %v575
    %642 = vmatprep.subr.bf16.mxu0 0
    %643 = vmatpush1.bf16.msra.mxu0 %v473
    %644 = vmatprep.subr.bf16.mxu0 0
    %645 = vmatpush1.bf16.msra.mxu0 %v472
    %646 = vmatprep.subr.bf16.mxu0 0
    %647 = vmatpush1.bf16.msra.mxu0 %v471
    %648 = vmatprep.subr.bf16.mxu0 0
    %649 = vmatpush1.bf16.msra.mxu0 %v470
    %650 = vmatprep.subr.bf16.mxu0 0
    %651 = vmatpush1.bf16.msra.mxu0 %v469
    %652 = vmatprep.subr.bf16.mxu0 0
    %653 = vmatpush1.bf16.msra.mxu0 %v468
    %654 = vmatprep.subr.bf16.mxu0 0
    %655 = vmatpush1.bf16.msra.mxu0 %v467
    %656 = vmatprep.subr.bf16.mxu0 0
    %657 = vmatpush1.bf16.msra.mxu0 %v466
    %658 = vmatprep.subr.bf16.mxu0 0
    %659 = vmatpush2.bf16.msra.mxu0 %v481
    %660 = vmatprep.subr.bf16.mxu0 0
    %661 = vmatpush2.bf16.msra.mxu0 %v480
    %662 = vmatprep.subr.bf16.mxu0 0
    %663 = vmatpush2.bf16.msra.mxu0 %v479
    %664 = vmatprep.subr.bf16.mxu0 0
    %665 = vmatpush2.bf16.msra.mxu0 %v478
    %666 = vmatprep.subr.bf16.mxu0 0
    %667 = vmatpush2.bf16.msra.mxu0 %v477
    %668 = vmatprep.subr.bf16.mxu0 0
    %669 = vmatpush2.bf16.msra.mxu0 %v476
    %670 = vmatprep.subr.bf16.mxu0 0
    %671 = vmatpush2.bf16.msra.mxu0 %v475
    %672 = vmatprep.subr.bf16.mxu0 0
    %673 = vmatpush2.bf16.msra.mxu0 %v474
    %674 = vmatprep.mubr.bf16.mxu0 %v579
    %675 = vmatmul.mubr.bf16.gmra.mxu0 %v578
    %v676 = vpop.f32.mrf.mxu0
    %v677 = vadd.f32 0.0, %v676
    %v678 = vpop.f32.mrf.mxu0
    %v679 = vpop.f32.mrf.mxu0
    %v680 = vadd.f32 0.0, %v679
    %v681 = vpop.f32.mrf.mxu0
    %682 = vmatprep.mubr.bf16.mxu0 %v581
    %683 = vmatmul.mubr.bf16.gmra.mxu0 %v580
    %v684 = vpop.f32.mrf.mxu0
    %v685 = vadd.f32 0.0, %v684
    %v686 = vpop.f32.mrf.mxu0
    %v687 = vpop.f32.mrf.mxu0
    %v688 = vadd.f32 0.0, %v687
    %v689 = vpop.f32.mrf.mxu0
    %690 = vmatprep.mubr.bf16.mxu0 %v583
    %691 = vmatmul.mubr.bf16.gmra.mxu0 %v582
    %v692 = vpop.f32.mrf.mxu0
    %v693 = vadd.f32 0.0, %v692
    %v694 = vpop.f32.mrf.mxu0
    %v695 = vpop.f32.mrf.mxu0
    %v696 = vadd.f32 0.0, %v695
    %v697 = vpop.f32.mrf.mxu0
    %698 = vmatprep.mubr.bf16.mxu0 %v585
    %699 = vmatmul.mubr.bf16.gmra.mxu0 %v584
    %v700 = vpop.f32.mrf.mxu0
    %v701 = vadd.f32 0.0, %v700
    %v702 = vpop.f32.mrf.mxu0
    %v703 = vpop.f32.mrf.mxu0
    %v704 = vadd.f32 0.0, %v703
    %v705 = vpop.f32.mrf.mxu0
    %706 = vmatprep.mubr.bf16.mxu0 %v587
    %707 = vmatmul.mubr.bf16.gmra.mxu0 %v586
    %v708 = vpop.f32.mrf.mxu0
    %v709 = vadd.f32 0.0, %v708
    %v710 = vpop.f32.mrf.mxu0
    %v711 = vpop.f32.mrf.mxu0
    %v712 = vadd.f32 0.0, %v711
    %v713 = vpop.f32.mrf.mxu0
    %714 = vmatprep.mubr.bf16.mxu0 %v589
    %715 = vmatmul.mubr.bf16.gmra.mxu0 %v588
    %v716 = vpop.f32.mrf.mxu0
    %v717 = vadd.f32 0.0, %v716
    %v718 = vpop.f32.mrf.mxu0
    %v719 = vpop.f32.mrf.mxu0
    %v720 = vadd.f32 0.0, %v719
    %v721 = vpop.f32.mrf.mxu0
    %722 = vmatprep.mubr.bf16.mxu0 %v591
    %723 = vmatmul.mubr.bf16.gmra.mxu0 %v590
    %v724 = vpop.f32.mrf.mxu0
    %v725 = vadd.f32 0.0, %v724
    %v726 = vpop.f32.mrf.mxu0
    %v727 = vpop.f32.mrf.mxu0
    %v728 = vadd.f32 0.0, %v727
    %v729 = vpop.f32.mrf.mxu0
    %730 = vmatprep.mubr.bf16.mxu0 %v593
    %731 = vmatmul.mubr.bf16.gmra.mxu0 %v592
    %v732 = vpop.f32.mrf.mxu0
    %v733 = vadd.f32 0.0, %v732
    %v734 = vpop.f32.mrf.mxu0
    %v735 = vpop.f32.mrf.mxu0
    %v736 = vadd.f32 0.0, %v735
    %v737 = vpop.f32.mrf.mxu0
    %738 = vmatprep.mubr.bf16.mxu0 %v595
    %739 = vmatmul.mubr.bf16.gmra.mxu0 %v594
    %v740 = vpop.f32.mrf.mxu0
    %v741 = vadd.f32 0.0, %v740
    %v742 = vpop.f32.mrf.mxu0
    %v743 = vpop.f32.mrf.mxu0
    %v744 = vadd.f32 0.0, %v743
    %v745 = vpop.f32.mrf.mxu0
    %746 = vmatprep.mubr.bf16.mxu0 %v597
    %747 = vmatmul.mubr.bf16.gmra.mxu0 %v596
    %v748 = vpop.f32.mrf.mxu0
    %v749 = vadd.f32 0.0, %v748
    %v750 = vpop.f32.mrf.mxu0
    %v751 = vpop.f32.mrf.mxu0
    %v752 = vadd.f32 0.0, %v751
    %v753 = vpop.f32.mrf.mxu0
    %754 = vmatprep.mubr.bf16.mxu0 %v599
    %755 = vmatmul.mubr.bf16.gmra.mxu0 %v598
    %v756 = vpop.f32.mrf.mxu0
    %v757 = vadd.f32 0.0, %v756
    %v758 = vpop.f32.mrf.mxu0
    %v759 = vpop.f32.mrf.mxu0
    %v760 = vadd.f32 0.0, %v759
    %v761 = vpop.f32.mrf.mxu0
    %762 = vmatprep.mubr.bf16.mxu0 %v601
    %763 = vmatmul.mubr.bf16.gmra.mxu0 %v600
    %v764 = vpop.f32.mrf.mxu0
    %v765 = vadd.f32 0.0, %v764
    %v766 = vpop.f32.mrf.mxu0
    %v767 = vpop.f32.mrf.mxu0
    %v768 = vadd.f32 0.0, %v767
    %v769 = vpop.f32.mrf.mxu0
    %770 = vmatprep.mubr.bf16.mxu0 %v603
    %771 = vmatmul.mubr.bf16.gmra.mxu0 %v602
    %v772 = vpop.f32.mrf.mxu0
    %v773 = vadd.f32 0.0, %v772
    %v774 = vpop.f32.mrf.mxu0
    %v775 = vpop.f32.mrf.mxu0
    %v776 = vadd.f32 0.0, %v775
    %v777 = vpop.f32.mrf.mxu0
    %778 = vmatprep.mubr.bf16.mxu0 %v605
    %779 = vmatmul.mubr.bf16.gmra.mxu0 %v604
    %v780 = vpop.f32.mrf.mxu0
    %v781 = vadd.f32 0.0, %v780
    %v782 = vpop.f32.mrf.mxu0
    %v783 = vpop.f32.mrf.mxu0
    %v784 = vadd.f32 0.0, %v783
    %v785 = vpop.f32.mrf.mxu0
    %786 = vmatprep.mubr.bf16.mxu0 %v607
    %787 = vmatmul.mubr.bf16.gmra.mxu0 %v606
    %v788 = vpop.f32.mrf.mxu0
    %v789 = vadd.f32 0.0, %v788
    %v790 = vpop.f32.mrf.mxu0
    %v791 = vpop.f32.mrf.mxu0
    %v792 = vadd.f32 0.0, %v791
    %v793 = vpop.f32.mrf.mxu0
    %794 = vmatprep.mubr.bf16.mxu0 %v609
    %795 = vmatmul.mubr.bf16.gmra.mxu0 %v608
    %v796 = vpop.f32.mrf.mxu0
    %v797 = vadd.f32 0.0, %v796
    %v798 = vpop.f32.mrf.mxu0
    %v799 = vpop.f32.mrf.mxu0
    %v800 = vadd.f32 0.0, %v799
    %v801 = vpop.f32.mrf.mxu0
    %802 = vdwg.mxu0
    %v803 = vadd.f32 %v402, %v677
    %v804 = vadd.f32 %v403, %v680
    %v805 = vadd.f32 %v404, %v685
    %v806 = vadd.f32 %v405, %v688
    %v807 = vadd.f32 %v406, %v693
    %v808 = vadd.f32 %v407, %v696
    %v809 = vadd.f32 %v408, %v701
    %v810 = vadd.f32 %v409, %v704
    %v811 = vadd.f32 %v410, %v709
    %v812 = vadd.f32 %v411, %v712
    %v813 = vadd.f32 %v412, %v717
    %v814 = vadd.f32 %v413, %v720
    %v815 = vadd.f32 %v414, %v725
    %v816 = vadd.f32 %v415, %v728
    %v817 = vadd.f32 %v416, %v733
    %v818 = vadd.f32 %v417, %v736
    %v819 = vadd.f32 %v418, %v741
    %v820 = vadd.f32 %v419, %v744
    %v821 = vadd.f32 %v420, %v749
    %v822 = vadd.f32 %v421, %v752
    %v823 = vadd.f32 %v422, %v757
    %v824 = vadd.f32 %v423, %v760
    %v825 = vadd.f32 %v424, %v765
    %v826 = vadd.f32 %v425, %v768
    %v827 = vadd.f32 %v426, %v773
    %v828 = vadd.f32 %v427, %v776
    %v829 = vadd.f32 %v428, %v781
    %v830 = vadd.f32 %v429, %v784
    %v831 = vadd.f32 %v430, %v789
    %v832 = vadd.f32 %v431, %v792
    %v833 = vadd.f32 %v432, %v797
    %v834 = vadd.f32 %v433, %v800
    %835 = vst [vmem:[#allocation2] sm:$0xff] %v803
    %836 = vst [vmem:[#allocation2 + $0x8] sm:$0xff] %v804
    %837 = vst [vmem:[#allocation2 + $0x10] sm:$0xff] %v805
    %838 = vst [vmem:[#allocation2 + $0x18] sm:$0xff] %v806
    %839 = vst [vmem:[#allocation2 + $0x20] sm:$0xff] %v807
    %840 = vst [vmem:[#allocation2 + $0x28] sm:$0xff] %v808
    %841 = vst [vmem:[#allocation2 + $0x30] sm:$0xff] %v809
    %842 = vst [vmem:[#allocation2 + $0x38] sm:$0xff] %v810
    %843 = vst [vmem:[#allocation2 + $0x40] sm:$0xff] %v811
    %844 = vst [vmem:[#allocation2 + $0x48] sm:$0xff] %v812
    %845 = vst [vmem:[#allocation2 + $0x50] sm:$0xff] %v813
    %846 = vst [vmem:[#allocation2 + $0x58] sm:$0xff] %v814
    %847 = vst [vmem:[#allocation2 + $0x60] sm:$0xff] %v815
    %848 = vst [vmem:[#allocation2 + $0x68] sm:$0xff] %v816
    %849 = vst [vmem:[#allocation2 + $0x70] sm:$0xff] %v817
    %850 = vst [vmem:[#allocation2 + $0x78] sm:$0xff] %v818
    %851 = vst [vmem:[#allocation2 + $0x80] sm:$0xff] %v819
    %852 = vst [vmem:[#allocation2 + $0x88] sm:$0xff] %v820
    %853 = vst [vmem:[#allocation2 + $0x90] sm:$0xff] %v821
    %854 = vst [vmem:[#allocation2 + $0x98] sm:$0xff] %v822
    %855 = vst [vmem:[#allocation2 + $0xa0] sm:$0xff] %v823
    %856 = vst [vmem:[#allocation2 + $0xa8] sm:$0xff] %v824
    %857 = vst [vmem:[#allocation2 + $0xb0] sm:$0xff] %v825
    %858 = vst [vmem:[#allocation2 + $0xb8] sm:$0xff] %v826
    %859 = vst [vmem:[#allocation2 + $0xc0] sm:$0xff] %v827
    %860 = vst [vmem:[#allocation2 + $0xc8] sm:$0xff] %v828
    %861 = vst [vmem:[#allocation2 + $0xd0] sm:$0xff] %v829
    %862 = vst [vmem:[#allocation2 + $0xd8] sm:$0xff] %v830
    %863 = vst [vmem:[#allocation2 + $0xe0] sm:$0xff] %v831
    %864 = vst [vmem:[#allocation2 + $0xe8] sm:$0xff] %v832
    %865 = vst [vmem:[#allocation2 + $0xf0] sm:$0xff] %v833
    %866 = vst [vmem:[#allocation2 + $0xf8] sm:$0xff] %v834
    // Predicated region
    $region50: #{tpu_custom_call.1} parent=1 // pred_check
      %p867 = pneg %p93
    $region51: #{tpu_custom_call.1} parent=1 // pred_check_branch
      %869 = sbr.rel (%p867) target = $region53
    $region52: #{tpu_custom_call.1} parent=1 // pred_region
      %v870 = vld [vmem:[%s5] sm:$0x1]
      %v871 = vld [vmem:[%s5 + $0x1] sm:$0x1]
      %v872 = vld [vmem:[%s5 + $0x2] sm:$0x1]
      %v873 = vld [vmem:[%s5 + $0x3] sm:$0x1]
      %v874 = vld [vmem:[#allocation8] sm:$0xff]
      %v875 = vld [vmem:[#allocation8 + $0x8] sm:$0xff]
      %v876 = vld [vmem:[#allocation8 + $0x10] sm:$0xff]
      %v877 = vld [vmem:[#allocation8 + $0x18] sm:$0xff]
      %v878 = vld [vmem:[#allocation8 + $0x20] sm:$0xff]
      %v879 = vld [vmem:[#allocation8 + $0x28] sm:$0xff]
      %v880 = vld [vmem:[#allocation8 + $0x30] sm:$0xff]
      %v881 = vld [vmem:[#allocation8 + $0x38] sm:$0xff]
      %v882 = vld [vmem:[#allocation8 + $0x40] sm:$0xff]
      %v883 = vld [vmem:[#allocation8 + $0x48] sm:$0xff]
      %v884 = vld [vmem:[#allocation8 + $0x50] sm:$0xff]
      %v885 = vld [vmem:[#allocation8 + $0x58] sm:$0xff]
      %v886 = vld [vmem:[#allocation8 + $0x60] sm:$0xff]
      %v887 = vld [vmem:[#allocation8 + $0x68] sm:$0xff]
      %v888 = vld [vmem:[#allocation8 + $0x70] sm:$0xff]
      %v889 = vld [vmem:[#allocation8 + $0x78] sm:$0xff]
      %v890 = vld [vmem:[#allocation8 + $0x80] sm:$0xff]
      %v891 = vld [vmem:[#allocation8 + $0x88] sm:$0xff]
      %v892 = vld [vmem:[#allocation8 + $0x90] sm:$0xff]
      %v893 = vld [vmem:[#allocation8 + $0x98] sm:$0xff]
      %v894 = vld [vmem:[#allocation8 + $0xa0] sm:$0xff]
      %v895 = vld [vmem:[#allocation8 + $0xa8] sm:$0xff]
      %v896 = vld [vmem:[#allocation8 + $0xb0] sm:$0xff]
      %v897 = vld [vmem:[#allocation8 + $0xb8] sm:$0xff]
      %v898 = vld [vmem:[#allocation8 + $0xc0] sm:$0xff]
      %v899 = vld [vmem:[#allocation8 + $0xc8] sm:$0xff]
      %v900 = vld [vmem:[#allocation8 + $0xd0] sm:$0xff]
      %v901 = vld [vmem:[#allocation8 + $0xd8] sm:$0xff]
      %v902 = vld [vmem:[#allocation8 + $0xe0] sm:$0xff]
      %v903 = vld [vmem:[#allocation8 + $0xe8] sm:$0xff]
      %v904 = vld [vmem:[#allocation8 + $0xf0] sm:$0xff]
      %v905 = vld [vmem:[#allocation8 + $0xf8] sm:$0xff]
      %v906 = vld [vmem:[#allocation11] sm:$0xff]
      %v907 = vld [vmem:[#allocation11 + $0x8] sm:$0xff]
      %v908 = vld [vmem:[#allocation11 + $0x10] sm:$0xff]
      %v909 = vld [vmem:[#allocation11 + $0x18] sm:$0xff]
      %v910 = vld [vmem:[#allocation11 + $0x20] sm:$0xff]
      %v911 = vld [vmem:[#allocation11 + $0x28] sm:$0xff]
      %v912 = vld [vmem:[#allocation11 + $0x30] sm:$0xff]
      %v913 = vld [vmem:[#allocation11 + $0x38] sm:$0xff]
      %v914 = vld [vmem:[#allocation11 + $0x40] sm:$0xff]
      %v915 = vld [vmem:[#allocation11 + $0x48] sm:$0xff]
      %v916 = vld [vmem:[#allocation11 + $0x50] sm:$0xff]
      %v917 = vld [vmem:[#allocation11 + $0x58] sm:$0xff]
      %v918 = vld [vmem:[#allocation11 + $0x60] sm:$0xff]
      %v919 = vld [vmem:[#allocation11 + $0x68] sm:$0xff]
      %v920 = vld [vmem:[#allocation11 + $0x70] sm:$0xff]
      %v921 = vld [vmem:[#allocation11 + $0x78] sm:$0xff]
      %v922 = vlaneseq
      %v923 = vshrl.u32 %v922, 7
      %v924 = vsub.s32 0, %v923
      %v925 = vrot.slane %v871, %v924
      %926 = vmatprep.subr.mxu0 0.0
      %927 = vmatpush1.msra.mxu0 %v921
      %928 = vmatprep.subr.mxu0 0.0
      %929 = vmatpush1.msra.mxu0 %v920
      %930 = vmatprep.subr.mxu0 0.0
      %931 = vmatpush1.msra.mxu0 %v919
      %932 = vmatprep.subr.mxu0 0.0
      %933 = vmatpush1.msra.mxu0 %v918
      %934 = vmatprep.subr.mxu0 0.0
      %935 = vmatpush1.msra.mxu0 %v917
      %936 = vmatprep.subr.mxu0 0.0
      %937 = vmatpush1.msra.mxu0 %v916
      %938 = vmatprep.subr.mxu0 0.0
      %939 = vmatpush1.msra.mxu0 %v915
      %940 = vmatprep.subr.mxu0 0.0
      %941 = vmatpush1.msra.mxu0 %v914
      %942 = vmatprep.subr.mxu0 0.0
      %943 = vmatpush1.msra.mxu0 %v913
      %944 = vmatprep.subr.mxu0 0.0
      %945 = vmatpush1.msra.mxu0 %v912
      %946 = vmatprep.subr.mxu0 0.0
      %947 = vmatpush1.msra.mxu0 %v911
      %948 = vmatprep.subr.mxu0 0.0
      %949 = vmatpush1.msra.mxu0 %v910
      %950 = vmatprep.subr.mxu0 0.0
      %951 = vmatpush1.msra.mxu0 %v909
      %952 = vmatprep.subr.mxu0 0.0
      %953 = vmatpush1.msra.mxu0 %v908
      %954 = vmatprep.subr.mxu0 0.0
      %955 = vmatpush1.msra.mxu0 %v907
      %956 = vmatprep.subr.mxu0 0.0
      %957 = vmatpush1.msra.mxu0 %v906
      %958 = vmatprep.subr.mxu0 0.0
      %959 = vmatpush2.msra.mxu0 0.0
      %960 = vmatprep.subr.mxu0 0.0
      %961 = vmatpush2.msra.mxu0 0.0
      %962 = vmatprep.subr.mxu0 0.0
      %963 = vmatpush2.msra.mxu0 0.0
      %964 = vmatprep.subr.mxu0 0.0
      %965 = vmatpush2.msra.mxu0 0.0
      %966 = vmatprep.subr.mxu0 0.0
      %967 = vmatpush2.msra.mxu0 0.0
      %968 = vmatprep.subr.mxu0 0.0
      %969 = vmatpush2.msra.mxu0 0.0
      %970 = vmatprep.subr.mxu0 0.0
      %971 = vmatpush2.msra.mxu0 0.0
      %972 = vmatprep.subr.mxu0 0.0
      %973 = vmatpush2.msra.mxu0 0.0
      %974 = vmatprep.subr.mxu0 0.0
      %975 = vmatpush2.msra.mxu0 0.0
      %976 = vmatprep.subr.mxu0 0.0
      %977 = vmatpush2.msra.mxu0 0.0
      %978 = vmatprep.subr.mxu0 0.0
      %979 = vmatpush2.msra.mxu0 0.0
      %980 = vmatprep.subr.mxu0 0.0
      %981 = vmatpush2.msra.mxu0 0.0
      %982 = vmatprep.subr.mxu0 0.0
      %983 = vmatpush2.msra.mxu0 0.0
      %984 = vmatprep.subr.mxu0 0.0
      %985 = vmatpush2.msra.mxu0 0.0
      %986 = vmatprep.subr.mxu0 0.0
      %987 = vmatpush2.msra.mxu0 0.0
      %988 = vmatprep.subr.mxu0 0.0
      %989 = vmatpush2.msra.mxu0 0.0
      %990 = vmatprep.mubr.f32.mxu0 0.0
      %991 = vmatmul.mubr.f32.gmra.mxu0 %v874
      %v992 = vpop.f32.mrf.mxu0
      %v993 = vadd.f32 %v925, %v992
      %v994 = vpop.f32.mrf.mxu0
      %995 = vmatprep.mubr.f32.mxu0 0.0
      %996 = vmatmul.mubr.f32.gmra.mxu0 %v875
      %v997 = vpop.f32.mrf.mxu0
      %v998 = vadd.f32 %v925, %v997
      %v999 = vpop.f32.mrf.mxu0
      %1000 = vmatprep.mubr.f32.mxu0 0.0
      %1001 = vmatmul.mubr.f32.gmra.mxu0 %v876
      %v1002 = vpop.f32.mrf.mxu0
      %v1003 = vadd.f32 %v925, %v1002
      %v1004 = vpop.f32.mrf.mxu0
      %1005 = vmatprep.mubr.f32.mxu0 0.0
      %1006 = vmatmul.mubr.f32.gmra.mxu0 %v877
      %v1007 = vpop.f32.mrf.mxu0
      %v1008 = vadd.f32 %v925, %v1007
      %v1009 = vpop.f32.mrf.mxu0
      %1010 = vmatprep.mubr.f32.mxu0 0.0
      %1011 = vmatmul.mubr.f32.gmra.mxu0 %v878
      %v1012 = vpop.f32.mrf.mxu0
      %v1013 = vadd.f32 %v925, %v1012
      %v1014 = vpop.f32.mrf.mxu0
      %1015 = vmatprep.mubr.f32.mxu0 0.0
      %1016 = vmatmul.mubr.f32.gmra.mxu0 %v879
      %v1017 = vpop.f32.mrf.mxu0
      %v1018 = vadd.f32 %v925, %v1017
      %v1019 = vpop.f32.mrf.mxu0
      %1020 = vmatprep.mubr.f32.mxu0 0.0
      %1021 = vmatmul.mubr.f32.gmra.mxu0 %v880
      %v1022 = vpop.f32.mrf.mxu0
      %v1023 = vadd.f32 %v925, %v1022
      %v1024 = vpop.f32.mrf.mxu0
      %1025 = vmatprep.mubr.f32.mxu0 0.0
      %1026 = vmatmul.mubr.f32.gmra.mxu0 %v881
      %v1027 = vpop.f32.mrf.mxu0
      %v1028 = vadd.f32 %v925, %v1027
      %v1029 = vpop.f32.mrf.mxu0
      %1030 = vmatprep.mubr.f32.mxu0 0.0
      %1031 = vmatmul.mubr.f32.gmra.mxu0 %v882
      %v1032 = vpop.f32.mrf.mxu0
      %v1033 = vadd.f32 %v925, %v1032
      %v1034 = vpop.f32.mrf.mxu0
      %1035 = vmatprep.mubr.f32.mxu0 0.0
      %1036 = vmatmul.mubr.f32.gmra.mxu0 %v883
      %v1037 = vpop.f32.mrf.mxu0
      %v1038 = vadd.f32 %v925, %v1037
      %v1039 = vpop.f32.mrf.mxu0
      %1040 = vmatprep.mubr.f32.mxu0 0.0
      %1041 = vmatmul.mubr.f32.gmra.mxu0 %v884
      %v1042 = vpop.f32.mrf.mxu0
      %v1043 = vadd.f32 %v925, %v1042
      %v1044 = vpop.f32.mrf.mxu0
      %1045 = vmatprep.mubr.f32.mxu0 0.0
      %1046 = vmatmul.mubr.f32.gmra.mxu0 %v885
      %v1047 = vpop.f32.mrf.mxu0
      %v1048 = vadd.f32 %v925, %v1047
      %v1049 = vpop.f32.mrf.mxu0
      %1050 = vmatprep.mubr.f32.mxu0 0.0
      %1051 = vmatmul.mubr.f32.gmra.mxu0 %v886
      %v1052 = vpop.f32.mrf.mxu0
      %v1053 = vadd.f32 %v925, %v1052
      %v1054 = vpop.f32.mrf.mxu0
      %1055 = vmatprep.mubr.f32.mxu0 0.0
      %1056 = vmatmul.mubr.f32.gmra.mxu0 %v887
      %v1057 = vpop.f32.mrf.mxu0
      %v1058 = vadd.f32 %v925, %v1057
      %v1059 = vpop.f32.mrf.mxu0
      %1060 = vmatprep.mubr.f32.mxu0 0.0
      %1061 = vmatmul.mubr.f32.gmra.mxu0 %v888
      %v1062 = vpop.f32.mrf.mxu0
      %v1063 = vadd.f32 %v925, %v1062
      %v1064 = vpop.f32.mrf.mxu0
      %1065 = vmatprep.mubr.f32.mxu0 0.0
      %1066 = vmatmul.mubr.f32.gmra.mxu0 %v889
      %v1067 = vpop.f32.mrf.mxu0
      %v1068 = vadd.f32 %v925, %v1067
      %v1069 = vpop.f32.mrf.mxu0
      %1070 = vmatprep.mubr.f32.mxu0 0.0
      %1071 = vmatmul.mubr.f32.gmra.mxu0 %v890
      %v1072 = vpop.f32.mrf.mxu0
      %v1073 = vadd.f32 %v925, %v1072
      %v1074 = vpop.f32.mrf.mxu0
      %1075 = vmatprep.mubr.f32.mxu0 0.0
      %1076 = vmatmul.mubr.f32.gmra.mxu0 %v891
      %v1077 = vpop.f32.mrf.mxu0
      %v1078 = vadd.f32 %v925, %v1077
      %v1079 = vpop.f32.mrf.mxu0
      %1080 = vmatprep.mubr.f32.mxu0 0.0
      %1081 = vmatmul.mubr.f32.gmra.mxu0 %v892
      %v1082 = vpop.f32.mrf.mxu0
      %v1083 = vadd.f32 %v925, %v1082
      %v1084 = vpop.f32.mrf.mxu0
      %1085 = vmatprep.mubr.f32.mxu0 0.0
      %1086 = vmatmul.mubr.f32.gmra.mxu0 %v893
      %v1087 = vpop.f32.mrf.mxu0
      %v1088 = vadd.f32 %v925, %v1087
      %v1089 = vpop.f32.mrf.mxu0
      %1090 = vmatprep.mubr.f32.mxu0 0.0
      %1091 = vmatmul.mubr.f32.gmra.mxu0 %v894
      %v1092 = vpop.f32.mrf.mxu0
      %v1093 = vadd.f32 %v925, %v1092
      %v1094 = vpop.f32.mrf.mxu0
      %1095 = vmatprep.mubr.f32.mxu0 0.0
      %1096 = vmatmul.mubr.f32.gmra.mxu0 %v895
      %v1097 = vpop.f32.mrf.mxu0
      %v1098 = vadd.f32 %v925, %v1097
      %v1099 = vpop.f32.mrf.mxu0
      %1100 = vmatprep.mubr.f32.mxu0 0.0
      %1101 = vmatmul.mubr.f32.gmra.mxu0 %v896
      %v1102 = vpop.f32.mrf.mxu0
      %v1103 = vadd.f32 %v925, %v1102
      %v1104 = vpop.f32.mrf.mxu0
      %1105 = vmatprep.mubr.f32.mxu0 0.0
      %1106 = vmatmul.mubr.f32.gmra.mxu0 %v897
      %v1107 = vpop.f32.mrf.mxu0
      %v1108 = vadd.f32 %v925, %v1107
      %v1109 = vpop.f32.mrf.mxu0
      %1110 = vmatprep.mubr.f32.mxu0 0.0
      %1111 = vmatmul.mubr.f32.gmra.mxu0 %v898
      %v1112 = vpop.f32.mrf.mxu0
      %v1113 = vadd.f32 %v925, %v1112
      %v1114 = vpop.f32.mrf.mxu0
      %1115 = vmatprep.mubr.f32.mxu0 0.0
      %1116 = vmatmul.mubr.f32.gmra.mxu0 %v899
      %v1117 = vpop.f32.mrf.mxu0
      %v1118 = vadd.f32 %v925, %v1117
      %v1119 = vpop.f32.mrf.mxu0
      %1120 = vmatprep.mubr.f32.mxu0 0.0
      %1121 = vmatmul.mubr.f32.gmra.mxu0 %v900
      %v1122 = vpop.f32.mrf.mxu0
      %v1123 = vadd.f32 %v925, %v1122
      %v1124 = vpop.f32.mrf.mxu0
      %1125 = vmatprep.mubr.f32.mxu0 0.0
      %1126 = vmatmul.mubr.f32.gmra.mxu0 %v901
      %v1127 = vpop.f32.mrf.mxu0
      %v1128 = vadd.f32 %v925, %v1127
      %v1129 = vpop.f32.mrf.mxu0
      %1130 = vmatprep.mubr.f32.mxu0 0.0
      %1131 = vmatmul.mubr.f32.gmra.mxu0 %v902
      %v1132 = vpop.f32.mrf.mxu0
      %v1133 = vadd.f32 %v925, %v1132
      %v1134 = vpop.f32.mrf.mxu0
      %1135 = vmatprep.mubr.f32.mxu0 0.0
      %1136 = vmatmul.mubr.f32.gmra.mxu0 %v903
      %v1137 = vpop.f32.mrf.mxu0
      %v1138 = vadd.f32 %v925, %v1137
      %v1139 = vpop.f32.mrf.mxu0
      %1140 = vmatprep.mubr.f32.mxu0 0.0
      %1141 = vmatmul.mubr.f32.gmra.mxu0 %v904
      %v1142 = vpop.f32.mrf.mxu0
      %v1143 = vadd.f32 %v925, %v1142
      %v1144 = vpop.f32.mrf.mxu0
      %1145 = vmatprep.mubr.f32.mxu0 0.0
      %1146 = vmatmul.mubr.f32.gmra.mxu0 %v905
      %v1147 = vpop.f32.mrf.mxu0
      %v1148 = vadd.f32 %v925, %v1147
      %v1149 = vpop.f32.mrf.mxu0
      %1150 = vdwg.mxu0
      %v1151 = vld [vmem:[#allocation2] sm:$0xff]
      %v1152 = vld [vmem:[#allocation2 + $0x8] sm:$0xff]
      %v1153 = vld [vmem:[#allocation2 + $0x10] sm:$0xff]
      %v1154 = vld [vmem:[#allocation2 + $0x18] sm:$0xff]
      %v1155 = vld [vmem:[#allocation2 + $0x20] sm:$0xff]
      %v1156 = vld [vmem:[#allocation2 + $0x28] sm:$0xff]
      %v1157 = vld [vmem:[#allocation2 + $0x30] sm:$0xff]
      %v1158 = vld [vmem:[#allocation2 + $0x38] sm:$0xff]
      %v1159 = vld [vmem:[#allocation2 + $0x40] sm:$0xff]
      %v1160 = vld [vmem:[#allocation2 + $0x48] sm:$0xff]
      %v1161 = vld [vmem:[#allocation2 + $0x50] sm:$0xff]
      %v1162 = vld [vmem:[#allocation2 + $0x58] sm:$0xff]
      %v1163 = vld [vmem:[#allocation2 + $0x60] sm:$0xff]
      %v1164 = vld [vmem:[#allocation2 + $0x68] sm:$0xff]
      %v1165 = vld [vmem:[#allocation2 + $0x70] sm:$0xff]
      %v1166 = vld [vmem:[#allocation2 + $0x78] sm:$0xff]
      %v1167 = vld [vmem:[#allocation2 + $0x80] sm:$0xff]
      %v1168 = vld [vmem:[#allocation2 + $0x88] sm:$0xff]
      %v1169 = vld [vmem:[#allocation2 + $0x90] sm:$0xff]
      %v1170 = vld [vmem:[#allocation2 + $0x98] sm:$0xff]
      %v1171 = vld [vmem:[#allocation2 + $0xa0] sm:$0xff]
      %v1172 = vld [vmem:[#allocation2 + $0xa8] sm:$0xff]
      %v1173 = vld [vmem:[#allocation2 + $0xb0] sm:$0xff]
      %v1174 = vld [vmem:[#allocation2 + $0xb8] sm:$0xff]
      %v1175 = vld [vmem:[#allocation2 + $0xc0] sm:$0xff]
      %v1176 = vld [vmem:[#allocation2 + $0xc8] sm:$0xff]
      %v1177 = vld [vmem:[#allocation2 + $0xd0] sm:$0xff]
      %v1178 = vld [vmem:[#allocation2 + $0xd8] sm:$0xff]
      %v1179 = vld [vmem:[#allocation2 + $0xe0] sm:$0xff]
      %v1180 = vld [vmem:[#allocation2 + $0xe8] sm:$0xff]
      %v1181 = vld [vmem:[#allocation2 + $0xf0] sm:$0xff]
      %v1182 = vld [vmem:[#allocation2 + $0xf8] sm:$0xff]
      %v1183 = vlaneseq
      %v1184 = vshrl.u32 %v1183, 7
      %v1185 = vsub.s32 0, %v1184
      %v1186 = vrot.slane %v870, %v1185
      %v1187 = vadd.f32 %v1151, %v1186
      %v1188 = vadd.f32 %v1152, %v1186
      %v1189 = vadd.f32 %v1153, %v1186
      %v1190 = vadd.f32 %v1154, %v1186
      %v1191 = vadd.f32 %v1155, %v1186
      %v1192 = vadd.f32 %v1156, %v1186
      %v1193 = vadd.f32 %v1157, %v1186
      %v1194 = vadd.f32 %v1158, %v1186
      %v1195 = vadd.f32 %v1159, %v1186
      %v1196 = vadd.f32 %v1160, %v1186
      %v1197 = vadd.f32 %v1161, %v1186
      %v1198 = vadd.f32 %v1162, %v1186
      %v1199 = vadd.f32 %v1163, %v1186
      %v1200 = vadd.f32 %v1164, %v1186
      %v1201 = vadd.f32 %v1165, %v1186
      %v1202 = vadd.f32 %v1166, %v1186
      %v1203 = vadd.f32 %v1167, %v1186
      %v1204 = vadd.f32 %v1168, %v1186
      %v1205 = vadd.f32 %v1169, %v1186
      %v1206 = vadd.f32 %v1170, %v1186
      %v1207 = vadd.f32 %v1171, %v1186
      %v1208 = vadd.f32 %v1172, %v1186
      %v1209 = vadd.f32 %v1173, %v1186
      %v1210 = vadd.f32 %v1174, %v1186
      %v1211 = vadd.f32 %v1175, %v1186
      %v1212 = vadd.f32 %v1176, %v1186
      %v1213 = vadd.f32 %v1177, %v1186
      %v1214 = vadd.f32 %v1178, %v1186
      %v1215 = vadd.f32 %v1179, %v1186
      %v1216 = vadd.f32 %v1180, %v1186
      %v1217 = vadd.f32 %v1181, %v1186
      %v1218 = vadd.f32 %v1182, %v1186
      %v1219 = vadd.f32 %v1187, %v993
      %v1220 = vadd.f32 %v1188, %v998
      %v1221 = vadd.f32 %v1189, %v1003
      %v1222 = vadd.f32 %v1190, %v1008
      %v1223 = vadd.f32 %v1191, %v1013
      %v1224 = vadd.f32 %v1192, %v1018
      %v1225 = vadd.f32 %v1193, %v1023
      %v1226 = vadd.f32 %v1194, %v1028
      %v1227 = vadd.f32 %v1195, %v1033
      %v1228 = vadd.f32 %v1196, %v1038
      %v1229 = vadd.f32 %v1197, %v1043
      %v1230 = vadd.f32 %v1198, %v1048
      %v1231 = vadd.f32 %v1199, %v1053
      %v1232 = vadd.f32 %v1200, %v1058
      %v1233 = vadd.f32 %v1201, %v1063
      %v1234 = vadd.f32 %v1202, %v1068
      %v1235 = vadd.f32 %v1203, %v1073
      %v1236 = vadd.f32 %v1204, %v1078
      %v1237 = vadd.f32 %v1205, %v1083
      %v1238 = vadd.f32 %v1206, %v1088
      %v1239 = vadd.f32 %v1207, %v1093
      %v1240 = vadd.f32 %v1208, %v1098
      %v1241 = vadd.f32 %v1209, %v1103
      %v1242 = vadd.f32 %v1210, %v1108
      %v1243 = vadd.f32 %v1211, %v1113
      %v1244 = vadd.f32 %v1212, %v1118
      %v1245 = vadd.f32 %v1213, %v1123
      %v1246 = vadd.f32 %v1214, %v1128
      %v1247 = vadd.f32 %v1215, %v1133
      %v1248 = vadd.f32 %v1216, %v1138
      %v1249 = vadd.f32 %v1217, %v1143
      %v1250 = vadd.f32 %v1218, %v1148
      %v1251 = vlaneseq
      %v1252 = vand.u32 %v1251, 127
      %vm1253 = vcmp.lt.s32.totalorder %v1252, 32
      %v1254 = vsel %vm1253, %v1219, 0.0
      %v1255 = vsel %vm1253, %v1220, 0.0
      %v1256 = vsel %vm1253, %v1221, 0.0
      %v1257 = vsel %vm1253, %v1222, 0.0
      %v1258 = vsel %vm1253, %v1223, 0.0
      %v1259 = vsel %vm1253, %v1224, 0.0
      %v1260 = vsel %vm1253, %v1225, 0.0
      %v1261 = vsel %vm1253, %v1226, 0.0
      %v1262 = vsel %vm1253, %v1227, 0.0
      %v1263 = vsel %vm1253, %v1228, 0.0
      %v1264 = vsel %vm1253, %v1229, 0.0
      %v1265 = vsel %vm1253, %v1230, 0.0
      %v1266 = vsel %vm1253, %v1231, 0.0
      %v1267 = vsel %vm1253, %v1232, 0.0
      %v1268 = vsel %vm1253, %v1233, 0.0
      %v1269 = vsel %vm1253, %v1234, 0.0
      %v1270 = vsel %vm1253, %v1235, 0.0
      %v1271 = vsel %vm1253, %v1236, 0.0
      %v1272 = vsel %vm1253, %v1237, 0.0
      %v1273 = vsel %vm1253, %v1238, 0.0
      %v1274 = vsel %vm1253, %v1239, 0.0
      %v1275 = vsel %vm1253, %v1240, 0.0
      %v1276 = vsel %vm1253, %v1241, 0.0
      %v1277 = vsel %vm1253, %v1242, 0.0
      %v1278 = vsel %vm1253, %v1243, 0.0
      %v1279 = vsel %vm1253, %v1244, 0.0
      %v1280 = vsel %vm1253, %v1245, 0.0
      %v1281 = vsel %vm1253, %v1246, 0.0
      %v1282 = vsel %vm1253, %v1247, 0.0
      %v1283 = vsel %vm1253, %v1248, 0.0
      %v1284 = vsel %vm1253, %v1249, 0.0
      %v1285 = vsel %vm1253, %v1250, 0.0
      %1286 = vadd.xlane.f32.xlu0 %v1254
      %v1287 = vpop.xlane.xlu0 %1286
      %1288 = vadd.xlane.f32.xlu0 %v1255
      %v1289 = vpop.xlane.xlu0 %1288
      %1290 = vadd.xlane.f32.xlu0 %v1256
      %v1291 = vpop.xlane.xlu0 %1290
      %1292 = vadd.xlane.f32.xlu0 %v1257
      %v1293 = vpop.xlane.xlu0 %1292
      %1294 = vadd.xlane.f32.xlu0 %v1258
      %v1295 = vpop.xlane.xlu0 %1294
      %1296 = vadd.xlane.f32.xlu0 %v1259
      %v1297 = vpop.xlane.xlu0 %1296
      %1298 = vadd.xlane.f32.xlu0 %v1260
      %v1299 = vpop.xlane.xlu0 %1298
      %1300 = vadd.xlane.f32.xlu0 %v1261
      %v1301 = vpop.xlane.xlu0 %1300
      %1302 = vadd.xlane.f32.xlu0 %v1262
      %v1303 = vpop.xlane.xlu0 %1302
      %1304 = vadd.xlane.f32.xlu0 %v1263
      %v1305 = vpop.xlane.xlu0 %1304
      %1306 = vadd.xlane.f32.xlu0 %v1264
      %v1307 = vpop.xlane.xlu0 %1306
      %1308 = vadd.xlane.f32.xlu0 %v1265
      %v1309 = vpop.xlane.xlu0 %1308
      %1310 = vadd.xlane.f32.xlu0 %v1266
      %v1311 = vpop.xlane.xlu0 %1310
      %1312 = vadd.xlane.f32.xlu0 %v1267
      %v1313 = vpop.xlane.xlu0 %1312
      %1314 = vadd.xlane.f32.xlu0 %v1268
      %v1315 = vpop.xlane.xlu0 %1314
      %1316 = vadd.xlane.f32.xlu0 %v1269
      %v1317 = vpop.xlane.xlu0 %1316
      %1318 = vadd.xlane.f32.xlu0 %v1270
      %v1319 = vpop.xlane.xlu0 %1318
      %1320 = vadd.xlane.f32.xlu0 %v1271
      %v1321 = vpop.xlane.xlu0 %1320
      %1322 = vadd.xlane.f32.xlu0 %v1272
      %v1323 = vpop.xlane.xlu0 %1322
      %1324 = vadd.xlane.f32.xlu0 %v1273
      %v1325 = vpop.xlane.xlu0 %1324
      %1326 = vadd.xlane.f32.xlu0 %v1274
      %v1327 = vpop.xlane.xlu0 %1326
      %1328 = vadd.xlane.f32.xlu0 %v1275
      %v1329 = vpop.xlane.xlu0 %1328
      %1330 = vadd.xlane.f32.xlu0 %v1276
      %v1331 = vpop.xlane.xlu0 %1330
      %1332 = vadd.xlane.f32.xlu0 %v1277
      %v1333 = vpop.xlane.xlu0 %1332
      %1334 = vadd.xlane.f32.xlu0 %v1278
      %v1335 = vpop.xlane.xlu0 %1334
      %1336 = vadd.xlane.f32.xlu0 %v1279
      %v1337 = vpop.xlane.xlu0 %1336
      %1338 = vadd.xlane.f32.xlu0 %v1280
      %v1339 = vpop.xlane.xlu0 %1338
      %1340 = vadd.xlane.f32.xlu0 %v1281
      %v1341 = vpop.xlane.xlu0 %1340
      %1342 = vadd.xlane.f32.xlu0 %v1282
      %v1343 = vpop.xlane.xlu0 %1342
      %1344 = vadd.xlane.f32.xlu0 %v1283
      %v1345 = vpop.xlane.xlu0 %1344
      %1346 = vadd.xlane.f32.xlu0 %v1284
      %v1347 = vpop.xlane.xlu0 %1346
      %1348 = vadd.xlane.f32.xlu0 %v1285
      %v1349 = vpop.xlane.xlu0 %1348
      %v1350 = vmul.f32 %v1287, 0.03125
      %v1351 = vmul.f32 %v1289, 0.03125
      %v1352 = vmul.f32 %v1291, 0.03125
      %v1353 = vmul.f32 %v1293, 0.03125
      %v1354 = vmul.f32 %v1295, 0.03125
      %v1355 = vmul.f32 %v1297, 0.03125
      %v1356 = vmul.f32 %v1299, 0.03125
      %v1357 = vmul.f32 %v1301, 0.03125
      %v1358 = vmul.f32 %v1303, 0.03125
      %v1359 = vmul.f32 %v1305, 0.03125
      %v1360 = vmul.f32 %v1307, 0.03125
      %v1361 = vmul.f32 %v1309, 0.03125
      %v1362 = vmul.f32 %v1311, 0.03125
      %v1363 = vmul.f32 %v1313, 0.03125
      %v1364 = vmul.f32 %v1315, 0.03125
      %v1365 = vmul.f32 %v1317, 0.03125
      %v1366 = vmul.f32 %v1319, 0.03125
      %v1367 = vmul.f32 %v1321, 0.03125
      %v1368 = vmul.f32 %v1323, 0.03125
      %v1369 = vmul.f32 %v1325, 0.03125
      %v1370 = vmul.f32 %v1327, 0.03125
      %v1371 = vmul.f32 %v1329, 0.03125
      %v1372 = vmul.f32 %v1331, 0.03125
      %v1373 = vmul.f32 %v1333, 0.03125
      %v1374 = vmul.f32 %v1335, 0.03125
      %v1375 = vmul.f32 %v1337, 0.03125
      %v1376 = vmul.f32 %v1339, 0.03125
      %v1377 = vmul.f32 %v1341, 0.03125
      %v1378 = vmul.f32 %v1343, 0.03125
      %v1379 = vmul.f32 %v1345, 0.03125
      %v1380 = vmul.f32 %v1347, 0.03125
      %v1381 = vmul.f32 %v1349, 0.03125
      %v1382 = vsub.f32 %v1219, %v1350
      %v1383 = vsub.f32 %v1220, %v1351
      %v1384 = vsub.f32 %v1221, %v1352
      %v1385 = vsub.f32 %v1222, %v1353
      %v1386 = vsub.f32 %v1223, %v1354
      %v1387 = vsub.f32 %v1224, %v1355
      %v1388 = vsub.f32 %v1225, %v1356
      %v1389 = vsub.f32 %v1226, %v1357
      %v1390 = vsub.f32 %v1227, %v1358
      %v1391 = vsub.f32 %v1228, %v1359
      %v1392 = vsub.f32 %v1229, %v1360
      %v1393 = vsub.f32 %v1230, %v1361
      %v1394 = vsub.f32 %v1231, %v1362
      %v1395 = vsub.f32 %v1232, %v1363
      %v1396 = vsub.f32 %v1233, %v1364
      %v1397 = vsub.f32 %v1234, %v1365
      %v1398 = vsub.f32 %v1235, %v1366
      %v1399 = vsub.f32 %v1236, %v1367
      %v1400 = vsub.f32 %v1237, %v1368
      %v1401 = vsub.f32 %v1238, %v1369
      %v1402 = vsub.f32 %v1239, %v1370
      %v1403 = vsub.f32 %v1240, %v1371
      %v1404 = vsub.f32 %v1241, %v1372
      %v1405 = vsub.f32 %v1242, %v1373
      %v1406 = vsub.f32 %v1243, %v1374
      %v1407 = vsub.f32 %v1244, %v1375
      %v1408 = vsub.f32 %v1245, %v1376
      %v1409 = vsub.f32 %v1246, %v1377
      %v1410 = vsub.f32 %v1247, %v1378
      %v1411 = vsub.f32 %v1248, %v1379
      %v1412 = vsub.f32 %v1249, %v1380
      %v1413 = vsub.f32 %v1250, %v1381
      %v1414 = vsel %vm1253, %v1382, 0.0
      %v1415 = vsel %vm1253, %v1383, 0.0
      %v1416 = vsel %vm1253, %v1384, 0.0
      %v1417 = vsel %vm1253, %v1385, 0.0
      %v1418 = vsel %vm1253, %v1386, 0.0
      %v1419 = vsel %vm1253, %v1387, 0.0
      %v1420 = vsel %vm1253, %v1388, 0.0
      %v1421 = vsel %vm1253, %v1389, 0.0
      %v1422 = vsel %vm1253, %v1390, 0.0
      %v1423 = vsel %vm1253, %v1391, 0.0
      %v1424 = vsel %vm1253, %v1392, 0.0
      %v1425 = vsel %vm1253, %v1393, 0.0
      %v1426 = vsel %vm1253, %v1394, 0.0
      %v1427 = vsel %vm1253, %v1395, 0.0
      %v1428 = vsel %vm1253, %v1396, 0.0
      %v1429 = vsel %vm1253, %v1397, 0.0
      %v1430 = vsel %vm1253, %v1398, 0.0
      %v1431 = vsel %vm1253, %v1399, 0.0
      %v1432 = vsel %vm1253, %v1400, 0.0
      %v1433 = vsel %vm1253, %v1401, 0.0
      %v1434 = vsel %vm1253, %v1402, 0.0
      %v1435 = vsel %vm1253, %v1403, 0.0
      %v1436 = vsel %vm1253, %v1404, 0.0
      %v1437 = vsel %vm1253, %v1405, 0.0
      %v1438 = vsel %vm1253, %v1406, 0.0
      %v1439 = vsel %vm1253, %v1407, 0.0
      %v1440 = vsel %vm1253, %v1408, 0.0
      %v1441 = vsel %vm1253, %v1409, 0.0
      %v1442 = vsel %vm1253, %v1410, 0.0
      %v1443 = vsel %vm1253, %v1411, 0.0
      %v1444 = vsel %vm1253, %v1412, 0.0
      %v1445 = vsel %vm1253, %v1413, 0.0
      %v1446 = vmul.f32 %v1414, %v1414
      %v1447 = vmul.f32 %v1415, %v1415
      %v1448 = vmul.f32 %v1416, %v1416
      %v1449 = vmul.f32 %v1417, %v1417
      %v1450 = vmul.f32 %v1418, %v1418
      %v1451 = vmul.f32 %v1419, %v1419
      %v1452 = vmul.f32 %v1420, %v1420
      %v1453 = vmul.f32 %v1421, %v1421
      %v1454 = vmul.f32 %v1422, %v1422
      %v1455 = vmul.f32 %v1423, %v1423
      %v1456 = vmul.f32 %v1424, %v1424
      %v1457 = vmul.f32 %v1425, %v1425
      %v1458 = vmul.f32 %v1426, %v1426
      %v1459 = vmul.f32 %v1427, %v1427
      %v1460 = vmul.f32 %v1428, %v1428
      %v1461 = vmul.f32 %v1429, %v1429
      %v1462 = vmul.f32 %v1430, %v1430
      %v1463 = vmul.f32 %v1431, %v1431
      %v1464 = vmul.f32 %v1432, %v1432
      %v1465 = vmul.f32 %v1433, %v1433
      %v1466 = vmul.f32 %v1434, %v1434
      %v1467 = vmul.f32 %v1435, %v1435
      %v1468 = vmul.f32 %v1436, %v1436
      %v1469 = vmul.f32 %v1437, %v1437
      %v1470 = vmul.f32 %v1438, %v1438
      %v1471 = vmul.f32 %v1439, %v1439
      %v1472 = vmul.f32 %v1440, %v1440
      %v1473 = vmul.f32 %v1441, %v1441
      %v1474 = vmul.f32 %v1442, %v1442
      %v1475 = vmul.f32 %v1443, %v1443
      %v1476 = vmul.f32 %v1444, %v1444
      %v1477 = vmul.f32 %v1445, %v1445
      %1478 = vadd.xlane.f32.xlu0 %v1446
      %v1479 = vpop.xlane.xlu0 %1478
      %1480 = vadd.xlane.f32.xlu0 %v1447
      %v1481 = vpop.xlane.xlu0 %1480
      %1482 = vadd.xlane.f32.xlu0 %v1448
      %v1483 = vpop.xlane.xlu0 %1482
      %1484 = vadd.xlane.f32.xlu0 %v1449
      %v1485 = vpop.xlane.xlu0 %1484
      %1486 = vadd.xlane.f32.xlu0 %v1450
      %v1487 = vpop.xlane.xlu0 %1486
      %1488 = vadd.xlane.f32.xlu0 %v1451
      %v1489 = vpop.xlane.xlu0 %1488
      %1490 = vadd.xlane.f32.xlu0 %v1452
      %v1491 = vpop.xlane.xlu0 %1490
      %1492 = vadd.xlane.f32.xlu0 %v1453
      %v1493 = vpop.xlane.xlu0 %1492
      %1494 = vadd.xlane.f32.xlu0 %v1454
      %v1495 = vpop.xlane.xlu0 %1494
      %1496 = vadd.xlane.f32.xlu0 %v1455
      %v1497 = vpop.xlane.xlu0 %1496
      %1498 = vadd.xlane.f32.xlu0 %v1456
      %v1499 = vpop.xlane.xlu0 %1498
      %1500 = vadd.xlane.f32.xlu0 %v1457
      %v1501 = vpop.xlane.xlu0 %1500
      %1502 = vadd.xlane.f32.xlu0 %v1458
      %v1503 = vpop.xlane.xlu0 %1502
      %1504 = vadd.xlane.f32.xlu0 %v1459
      %v1505 = vpop.xlane.xlu0 %1504
      %1506 = vadd.xlane.f32.xlu0 %v1460
      %v1507 = vpop.xlane.xlu0 %1506
      %1508 = vadd.xlane.f32.xlu0 %v1461
      %v1509 = vpop.xlane.xlu0 %1508
      %1510 = vadd.xlane.f32.xlu0 %v1462
      %v1511 = vpop.xlane.xlu0 %1510
      %1512 = vadd.xlane.f32.xlu0 %v1463
      %v1513 = vpop.xlane.xlu0 %1512
      %1514 = vadd.xlane.f32.xlu0 %v1464
      %v1515 = vpop.xlane.xlu0 %1514
      %1516 = vadd.xlane.f32.xlu0 %v1465
      %v1517 = vpop.xlane.xlu0 %1516
      %1518 = vadd.xlane.f32.xlu0 %v1466
      %v1519 = vpop.xlane.xlu0 %1518
      %1520 = vadd.xlane.f32.xlu0 %v1467
      %v1521 = vpop.xlane.xlu0 %1520
      %1522 = vadd.xlane.f32.xlu0 %v1468
      %v1523 = vpop.xlane.xlu0 %1522
      %1524 = vadd.xlane.f32.xlu0 %v1469
      %v1525 = vpop.xlane.xlu0 %1524
      %1526 = vadd.xlane.f32.xlu0 %v1470
      %v1527 = vpop.xlane.xlu0 %1526
      %1528 = vadd.xlane.f32.xlu0 %v1471
      %v1529 = vpop.xlane.xlu0 %1528
      %1530 = vadd.xlane.f32.xlu0 %v1472
      %v1531 = vpop.xlane.xlu0 %1530
      %1532 = vadd.xlane.f32.xlu0 %v1473
      %v1533 = vpop.xlane.xlu0 %1532
      %1534 = vadd.xlane.f32.xlu0 %v1474
      %v1535 = vpop.xlane.xlu0 %1534
      %1536 = vadd.xlane.f32.xlu0 %v1475
      %v1537 = vpop.xlane.xlu0 %1536
      %1538 = vadd.xlane.f32.xlu0 %v1476
      %v1539 = vpop.xlane.xlu0 %1538
      %1540 = vadd.xlane.f32.xlu0 %v1477
      %v1541 = vpop.xlane.xlu0 %1540
      %v1542 = vmul.f32 %v1479, 0.03125
      %v1543 = vmul.f32 %v1481, 0.03125
      %v1544 = vmul.f32 %v1483, 0.03125
      %v1545 = vmul.f32 %v1485, 0.03125
      %v1546 = vmul.f32 %v1487, 0.03125
      %v1547 = vmul.f32 %v1489, 0.03125
      %v1548 = vmul.f32 %v1491, 0.03125
      %v1549 = vmul.f32 %v1493, 0.03125
      %v1550 = vmul.f32 %v1495, 0.03125
      %v1551 = vmul.f32 %v1497, 0.03125
      %v1552 = vmul.f32 %v1499, 0.03125
      %v1553 = vmul.f32 %v1501, 0.03125
      %v1554 = vmul.f32 %v1503, 0.03125
      %v1555 = vmul.f32 %v1505, 0.03125
      %v1556 = vmul.f32 %v1507, 0.03125
      %v1557 = vmul.f32 %v1509, 0.03125
      %v1558 = vmul.f32 %v1511, 0.03125
      %v1559 = vmul.f32 %v1513, 0.03125
      %v1560 = vmul.f32 %v1515, 0.03125
      %v1561 = vmul.f32 %v1517, 0.03125
      %v1562 = vmul.f32 %v1519, 0.03125
      %v1563 = vmul.f32 %v1521, 0.03125
      %v1564 = vmul.f32 %v1523, 0.03125
      %v1565 = vmul.f32 %v1525, 0.03125
      %v1566 = vmul.f32 %v1527, 0.03125
      %v1567 = vmul.f32 %v1529, 0.03125
      %v1568 = vmul.f32 %v1531, 0.03125
      %v1569 = vmul.f32 %v1533, 0.03125
      %v1570 = vmul.f32 %v1535, 0.03125
      %v1571 = vmul.f32 %v1537, 0.03125
      %v1572 = vmul.f32 %v1539, 0.03125
      %v1573 = vmul.f32 %v1541, 0.03125
      %v1574 = vadd.f32 %v1542, 1e-05
      %v1575 = vadd.f32 %v1543, 1e-05
      %v1576 = vadd.f32 %v1544, 1e-05
      %v1577 = vadd.f32 %v1545, 1e-05
      %v1578 = vadd.f32 %v1546, 1e-05
      %v1579 = vadd.f32 %v1547, 1e-05
      %v1580 = vadd.f32 %v1548, 1e-05
      %v1581 = vadd.f32 %v1549, 1e-05
      %v1582 = vadd.f32 %v1550, 1e-05
      %v1583 = vadd.f32 %v1551, 1e-05
      %v1584 = vadd.f32 %v1552, 1e-05
      %v1585 = vadd.f32 %v1553, 1e-05
      %v1586 = vadd.f32 %v1554, 1e-05
      %v1587 = vadd.f32 %v1555, 1e-05
      %v1588 = vadd.f32 %v1556, 1e-05
      %v1589 = vadd.f32 %v1557, 1e-05
      %v1590 = vadd.f32 %v1558, 1e-05
      %v1591 = vadd.f32 %v1559, 1e-05
      %v1592 = vadd.f32 %v1560, 1e-05
      %v1593 = vadd.f32 %v1561, 1e-05
      %v1594 = vadd.f32 %v1562, 1e-05
      %v1595 = vadd.f32 %v1563, 1e-05
      %v1596 = vadd.f32 %v1564, 1e-05
      %v1597 = vadd.f32 %v1565, 1e-05
      %v1598 = vadd.f32 %v1566, 1e-05
      %v1599 = vadd.f32 %v1567, 1e-05
      %v1600 = vadd.f32 %v1568, 1e-05
      %v1601 = vadd.f32 %v1569, 1e-05
      %v1602 = vadd.f32 %v1570, 1e-05
      %v1603 = vadd.f32 %v1571, 1e-05
      %v1604 = vadd.f32 %v1572, 1e-05
      %v1605 = vadd.f32 %v1573, 1e-05
      %v1606 = vrsqrt.pop %v1574
      %v1607 = vrsqrt.pop %v1575
      %v1608 = vrsqrt.pop %v1576
      %v1609 = vrsqrt.pop %v1577
      %v1610 = vrsqrt.pop %v1578
      %v1611 = vrsqrt.pop %v1579
      %v1612 = vrsqrt.pop %v1580
      %v1613 = vrsqrt.pop %v1581
      %v1614 = vrsqrt.pop %v1582
      %v1615 = vrsqrt.pop %v1583
      %v1616 = vrsqrt.pop %v1584
      %v1617 = vrsqrt.pop %v1585
      %v1618 = vrsqrt.pop %v1586
      %v1619 = vrsqrt.pop %v1587
      %v1620 = vrsqrt.pop %v1588
      %v1621 = vrsqrt.pop %v1589
      %v1622 = vrsqrt.pop %v1590
      %v1623 = vrsqrt.pop %v1591
      %v1624 = vrsqrt.pop %v1592
      %v1625 = vrsqrt.pop %v1593
      %v1626 = vrsqrt.pop %v1594
      %v1627 = vrsqrt.pop %v1595
      %v1628 = vrsqrt.pop %v1596
      %v1629 = vrsqrt.pop %v1597
      %v1630 = vrsqrt.pop %v1598
      %v1631 = vrsqrt.pop %v1599
      %v1632 = vrsqrt.pop %v1600
      %v1633 = vrsqrt.pop %v1601
      %v1634 = vrsqrt.pop %v1602
      %v1635 = vrsqrt.pop %v1603
      %v1636 = vrsqrt.pop %v1604
      %v1637 = vrsqrt.pop %v1605
      %v1638 = vmul.f32 %v1382, %v1606
      %v1639 = vmul.f32 %v1383, %v1607
      %v1640 = vmul.f32 %v1384, %v1608
      %v1641 = vmul.f32 %v1385, %v1609
      %v1642 = vmul.f32 %v1386, %v1610
      %v1643 = vmul.f32 %v1387, %v1611
      %v1644 = vmul.f32 %v1388, %v1612
      %v1645 = vmul.f32 %v1389, %v1613
      %v1646 = vmul.f32 %v1390, %v1614
      %v1647 = vmul.f32 %v1391, %v1615
      %v1648 = vmul.f32 %v1392, %v1616
      %v1649 = vmul.f32 %v1393, %v1617
      %v1650 = vmul.f32 %v1394, %v1618
      %v1651 = vmul.f32 %v1395, %v1619
      %v1652 = vmul.f32 %v1396, %v1620
      %v1653 = vmul.f32 %v1397, %v1621
      %v1654 = vmul.f32 %v1398, %v1622
      %v1655 = vmul.f32 %v1399, %v1623
      %v1656 = vmul.f32 %v1400, %v1624
      %v1657 = vmul.f32 %v1401, %v1625
      %v1658 = vmul.f32 %v1402, %v1626
      %v1659 = vmul.f32 %v1403, %v1627
      %v1660 = vmul.f32 %v1404, %v1628
      %v1661 = vmul.f32 %v1405, %v1629
      %v1662 = vmul.f32 %v1406, %v1630
      %v1663 = vmul.f32 %v1407, %v1631
      %v1664 = vmul.f32 %v1408, %v1632
      %v1665 = vmul.f32 %v1409, %v1633
      %v1666 = vmul.f32 %v1410, %v1634
      %v1667 = vmul.f32 %v1411, %v1635
      %v1668 = vmul.f32 %v1412, %v1636
      %v1669 = vmul.f32 %v1413, %v1637
      %v1670 = vlaneseq
      %v1671 = vshrl.u32 %v1670, 7
      %v1672 = vsub.s32 0, %v1671
      %v1673 = vrot.slane %v872, %v1672
      %v1674 = vmul.f32 %v1638, %v1673
      %v1675 = vmul.f32 %v1639, %v1673
      %v1676 = vmul.f32 %v1640, %v1673
      %v1677 = vmul.f32 %v1641, %v1673
      %v1678 = vmul.f32 %v1642, %v1673
      %v1679 = vmul.f32 %v1643, %v1673
      %v1680 = vmul.f32 %v1644, %v1673
      %v1681 = vmul.f32 %v1645, %v1673
      %v1682 = vmul.f32 %v1646, %v1673
      %v1683 = vmul.f32 %v1647, %v1673
      %v1684 = vmul.f32 %v1648, %v1673
      %v1685 = vmul.f32 %v1649, %v1673
      %v1686 = vmul.f32 %v1650, %v1673
      %v1687 = vmul.f32 %v1651, %v1673
      %v1688 = vmul.f32 %v1652, %v1673
      %v1689 = vmul.f32 %v1653, %v1673
      %v1690 = vmul.f32 %v1654, %v1673
      %v1691 = vmul.f32 %v1655, %v1673
      %v1692 = vmul.f32 %v1656, %v1673
      %v1693 = vmul.f32 %v1657, %v1673
      %v1694 = vmul.f32 %v1658, %v1673
      %v1695 = vmul.f32 %v1659, %v1673
      %v1696 = vmul.f32 %v1660, %v1673
      %v1697 = vmul.f32 %v1661, %v1673
      %v1698 = vmul.f32 %v1662, %v1673
      %v1699 = vmul.f32 %v1663, %v1673
      %v1700 = vmul.f32 %v1664, %v1673
      %v1701 = vmul.f32 %v1665, %v1673
      %v1702 = vmul.f32 %v1666, %v1673
      %v1703 = vmul.f32 %v1667, %v1673
      %v1704 = vmul.f32 %v1668, %v1673
      %v1705 = vmul.f32 %v1669, %v1673
      %v1706 = vlaneseq
      %v1707 = vshrl.u32 %v1706, 7
      %v1708 = vsub.s32 0, %v1707
      %v1709 = vrot.slane %v873, %v1708
      %v1710 = vadd.f32 %v1674, %v1709
      %v1711 = vadd.f32 %v1675, %v1709
      %v1712 = vadd.f32 %v1676, %v1709
      %v1713 = vadd.f32 %v1677, %v1709
      %v1714 = vadd.f32 %v1678, %v1709
      %v1715 = vadd.f32 %v1679, %v1709
      %v1716 = vadd.f32 %v1680, %v1709
      %v1717 = vadd.f32 %v1681, %v1709
      %v1718 = vadd.f32 %v1682, %v1709
      %v1719 = vadd.f32 %v1683, %v1709
      %v1720 = vadd.f32 %v1684, %v1709
      %v1721 = vadd.f32 %v1685, %v1709
      %v1722 = vadd.f32 %v1686, %v1709
      %v1723 = vadd.f32 %v1687, %v1709
      %v1724 = vadd.f32 %v1688, %v1709
      %v1725 = vadd.f32 %v1689, %v1709
      %v1726 = vadd.f32 %v1690, %v1709
      %v1727 = vadd.f32 %v1691, %v1709
      %v1728 = vadd.f32 %v1692, %v1709
      %v1729 = vadd.f32 %v1693, %v1709
      %v1730 = vadd.f32 %v1694, %v1709
      %v1731 = vadd.f32 %v1695, %v1709
      %v1732 = vadd.f32 %v1696, %v1709
      %v1733 = vadd.f32 %v1697, %v1709
      %v1734 = vadd.f32 %v1698, %v1709
      %v1735 = vadd.f32 %v1699, %v1709
      %v1736 = vadd.f32 %v1700, %v1709
      %v1737 = vadd.f32 %v1701, %v1709
      %v1738 = vadd.f32 %v1702, %v1709
      %v1739 = vadd.f32 %v1703, %v1709
      %v1740 = vadd.f32 %v1704, %v1709
      %v1741 = vadd.f32 %v1705, %v1709
      %v1742 = vmax.f32 %v1710, 0.0
      %v1743 = vmax.f32 %v1711, 0.0
      %v1744 = vmax.f32 %v1712, 0.0
      %v1745 = vmax.f32 %v1713, 0.0
      %v1746 = vmax.f32 %v1714, 0.0
      %v1747 = vmax.f32 %v1715, 0.0
      %v1748 = vmax.f32 %v1716, 0.0
      %v1749 = vmax.f32 %v1717, 0.0
      %v1750 = vmax.f32 %v1718, 0.0
      %v1751 = vmax.f32 %v1719, 0.0
      %v1752 = vmax.f32 %v1720, 0.0
      %v1753 = vmax.f32 %v1721, 0.0
      %v1754 = vmax.f32 %v1722, 0.0
      %v1755 = vmax.f32 %v1723, 0.0
      %v1756 = vmax.f32 %v1724, 0.0
      %v1757 = vmax.f32 %v1725, 0.0
      %v1758 = vmax.f32 %v1726, 0.0
      %v1759 = vmax.f32 %v1727, 0.0
      %v1760 = vmax.f32 %v1728, 0.0
      %v1761 = vmax.f32 %v1729, 0.0
      %v1762 = vmax.f32 %v1730, 0.0
      %v1763 = vmax.f32 %v1731, 0.0
      %v1764 = vmax.f32 %v1732, 0.0
      %v1765 = vmax.f32 %v1733, 0.0
      %v1766 = vmax.f32 %v1734, 0.0
      %v1767 = vmax.f32 %v1735, 0.0
      %v1768 = vmax.f32 %v1736, 0.0
      %v1769 = vmax.f32 %v1737, 0.0
      %v1770 = vmax.f32 %v1738, 0.0
      %v1771 = vmax.f32 %v1739, 0.0
      %v1772 = vmax.f32 %v1740, 0.0
      %v1773 = vmax.f32 %v1741, 0.0
      %1774 = vst [vmem:[#allocation12] sm:$0xff] %v1742
      %1775 = vst [vmem:[#allocation12 + $0x8] sm:$0xff] %v1743
      %1776 = vst [vmem:[#allocation12 + $0x10] sm:$0xff] %v1744
      %1777 = vst [vmem:[#allocation12 + $0x18] sm:$0xff] %v1745
      %1778 = vst [vmem:[#allocation12 + $0x20] sm:$0xff] %v1746
      %1779 = vst [vmem:[#allocation12 + $0x28] sm:$0xff] %v1747
      %1780 = vst [vmem:[#allocation12 + $0x30] sm:$0xff] %v1748
      %1781 = vst [vmem:[#allocation12 + $0x38] sm:$0xff] %v1749
      %1782 = vst [vmem:[#allocation12 + $0x40] sm:$0xff] %v1750
      %1783 = vst [vmem:[#allocation12 + $0x48] sm:$0xff] %v1751
      %1784 = vst [vmem:[#allocation12 + $0x50] sm:$0xff] %v1752
      %1785 = vst [vmem:[#allocation12 + $0x58] sm:$0xff] %v1753
      %1786 = vst [vmem:[#allocation12 + $0x60] sm:$0xff] %v1754
      %1787 = vst [vmem:[#allocation12 + $0x68] sm:$0xff] %v1755
      %1788 = vst [vmem:[#allocation12 + $0x70] sm:$0xff] %v1756
      %1789 = vst [vmem:[#allocation12 + $0x78] sm:$0xff] %v1757
      %1790 = vst [vmem:[#allocation12 + $0x80] sm:$0xff] %v1758
      %1791 = vst [vmem:[#allocation12 + $0x88] sm:$0xff] %v1759
      %1792 = vst [vmem:[#allocation12 + $0x90] sm:$0xff] %v1760
      %1793 = vst [vmem:[#allocation12 + $0x98] sm:$0xff] %v1761
      %1794 = vst [vmem:[#allocation12 + $0xa0] sm:$0xff] %v1762
      %1795 = vst [vmem:[#allocation12 + $0xa8] sm:$0xff] %v1763
      %1796 = vst [vmem:[#allocation12 + $0xb0] sm:$0xff] %v1764
      %1797 = vst [vmem:[#allocation12 + $0xb8] sm:$0xff] %v1765
      %1798 = vst [vmem:[#allocation12 + $0xc0] sm:$0xff] %v1766
      %1799 = vst [vmem:[#allocation12 + $0xc8] sm:$0xff] %v1767
      %1800 = vst [vmem:[#allocation12 + $0xd0] sm:$0xff] %v1768
      %1801 = vst [vmem:[#allocation12 + $0xd8] sm:$0xff] %v1769
      %1802 = vst [vmem:[#allocation12 + $0xe0] sm:$0xff] %v1770
      %1803 = vst [vmem:[#allocation12 + $0xe8] sm:$0xff] %v1771
      %1804 = vst [vmem:[#allocation12 + $0xf0] sm:$0xff] %v1772
      %1805 = vst [vmem:[#allocation12 + $0xf8] sm:$0xff] %v1773
    $region53: #{tpu_custom_call.1} parent=1 // pred_fallthru
      _
    // Predicated region
    $region54: #{tpu_custom_call.1} parent=1 // pred_check
      _
    $region55: #{tpu_custom_call.1} parent=1 // pred_check_branch
      %1807 = sbr.rel (0) target = $region57
    $region56: #{tpu_custom_call.1} parent=1 // pred_region
      %s1809 = ssub.s32 4096, 4096
      %1810 = vsyncadd [#allocation5], %s1809
      %s1811 = sshll.u32 [#allocation12], 4
      %s1812 = int_to_ptr.vmem [resolvable:$true] %s1811
      %1817 = dma.vmem_to_hbm [thread:$0]  %s1812, 4096, %s6, [#allocation5], 128, 128, 8
    $region57: #{tpu_custom_call.1} parent=1 // pred_fallthru
      _
    // Predicated region
    $region58: #{tpu_custom_call.1} parent=1 // pred_check
      _
    $region59: #{tpu_custom_call.1} parent=1 // pred_check_branch
      %1819 = sbr.rel (0) target = $region61
    $region60: #{tpu_custom_call.1} parent=1 // pred_region
      %1820 = dma.done [#allocation5], 4096
    $region61: #{tpu_custom_call.1} parent=1 // pred_fallthru
      _
    %1821 = vsyncpa [#allocation4], 1
    %1822 = vsyncpa [#allocation7], 1
    %1823 = vsyncpa [#allocation10], 1
    %1824 = vsyncpa [#allocation5], 1

</llo_original>
